<compile_context>
chip_gen: v5e
topology: v5e:2x2
jax: 0.10.0
libtpu: 0.0.40
codegen_flags: <defaults>
</compile_context>

<pallas_src>
import functools

import jax
import jax.numpy as jnp
from jax.experimental import pallas as pl
from jax.experimental.pallas import tpu as pltpu


# ----------------------------------------------------------------------------
# Kernel
# ----------------------------------------------------------------------------
def _mha_kernel(*refs, n_heads, d_k, d_v, self_attn, return_attn):
    if self_attn:
        x_ref = refs[0]
        wqkv_ref, bqkv_ref, wo_ref, bo_ref = refs[1:5]
        rest = refs[5:]
        bt, seq, d_model_p = x_ref.shape
    else:
        q_in_ref, k_in_ref, v_in_ref = refs[0:3]
        wqkv_ref, bqkv_ref, wo_ref, bo_ref = refs[3:7]
        rest = refs[7:]
        bt, seq, d_model_p = q_in_ref.shape

    if return_attn:
        out_ref, attn_ref, o_scr = rest
    else:
        out_ref, o_scr = rest
        attn_ref = None

    rows = bt * seq
    dq = n_heads * d_k
    dv_all = n_heads * d_v
    d_out_p = wo_ref.shape[1]

    b_all = bqkv_ref[...]                        # (1, 2*dq + dv_all) f32

    if self_attn:
        # One fused projection: fills the 256-wide MXU (3x wider N).
        x = x_ref[...].reshape(rows, d_model_p).astype(jnp.bfloat16)
        qkv = jnp.dot(x, wqkv_ref[...],
                      preferred_element_type=jnp.float32) + b_all
        qp = qkv[:, :dq]                         # scale already folded into W_Q
        kp = qkv[:, dq:2 * dq]
        vp = qkv[:, 2 * dq:]
    else:
        wqkv = wqkv_ref[...]
        xq = q_in_ref[...].reshape(rows, d_model_p).astype(jnp.bfloat16)
        xk = k_in_ref[...].reshape(rows, d_model_p).astype(jnp.bfloat16)
        xv = v_in_ref[...].reshape(rows, d_model_p).astype(jnp.bfloat16)
        qp = jnp.dot(xq, wqkv[:, :dq],
                     preferred_element_type=jnp.float32) + b_all[:, :dq]
        kp = jnp.dot(xk, wqkv[:, dq:2 * dq],
                     preferred_element_type=jnp.float32) + b_all[:, dq:2 * dq]
        vp = jnp.dot(xv, wqkv[:, 2 * dq:],
                     preferred_element_type=jnp.float32) + b_all[:, 2 * dq:]

    qp = qp.reshape(bt, seq, dq).astype(jnp.bfloat16)
    kp = kp.reshape(bt, seq, dq).astype(jnp.bfloat16)
    vp = vp.reshape(bt, seq, dv_all).astype(jnp.bfloat16)

    # Static unroll over heads; each iteration is bt-batched MXU work.
    # Contractions are on the LAST dims of both operands (no XLU transpose).
    for h in range(n_heads):
        qh = qp[:, :, h * d_k:(h + 1) * d_k]
        kh = kp[:, :, h * d_k:(h + 1) * d_k]
        vh = vp[:, :, h * d_v:(h + 1) * d_v]

        s = jnp.einsum('bqd,bkd->bqk', qh, kh,
                       preferred_element_type=jnp.float32)     # f32 scores
        m = jnp.max(s, axis=-1, keepdims=True)
        p = jnp.exp(s - m)
        inv = pl.reciprocal(jnp.sum(p, axis=-1, keepdims=True), approx=True)

        if return_attn:
            attn = p * inv
            attn_ref[:, h] = attn.astype(attn_ref.dtype)        # bf16 writeback
            oh = jnp.einsum('bqk,bkd->bqd', attn.astype(jnp.bfloat16), vh,
                            preferred_element_type=jnp.float32)
        else:
            # Normalize AFTER the V matmul (d_v << seq -> fewer VPU multiplies
            # and fewer exp-adjacent ops; helps EUP-bound v5e).
            oh = jnp.einsum('bqk,bkd->bqd', p.astype(jnp.bfloat16), vh,
                            preferred_element_type=jnp.float32) * inv

        # Lane-slice store into the concat scratch (no jnp.concatenate copies).
        o_scr[:, :, h * d_v:(h + 1) * d_v] = oh.astype(jnp.bfloat16)

    # Head concat + output projection as ONE full-K matmul (K = n_heads*d_v).
    o_all = o_scr[...].reshape(rows, dv_all)
    out = jnp.dot(o_all, wo_ref[...],
                  preferred_element_type=jnp.float32) + bo_ref[...]
    out_ref[...] = out.reshape(bt, seq, d_out_p).astype(out_ref.dtype)


# ----------------------------------------------------------------------------
# Tiling helpers
# ----------------------------------------------------------------------------
def _round_up(x, m):
    return ((x + m - 1) // m) * m


def _vmem_capacity_bytes():
    try:
        cap = getattr(pltpu.get_tpu_info(), "vmem_capacity_bytes", None)
        if cap:
            return int(cap)
    except Exception:
        pass
    return 64 * 1024 * 1024          # v7x per-TC VMEM (smallest across gens)


def _step_vmem_bytes(bt, seq, d_model_p, d_out_p, dq, dv_all, n_heads,
                     n_act_inputs, return_attn, act_itemsize):
    """Per-grid-step VMEM estimate (double-buffered blocks + f32 intermediates)."""
    rows = bt * seq
    qkv_cols = 2 * dq + dv_all
    blocks = (2 * n_act_inputs * bt * seq * d_model_p * act_itemsize   # inputs
              + 2 * rows * d_out_p * act_itemsize)                     # output
    if return_attn:
        blocks += 2 * bt * n_heads * seq * seq * 2                     # bf16 attn
    # weights/biases: charge 2x (worst case if single-buffering is rejected)
    weights = 2 * (d_model_p * qkv_cols * 2 + dv_all * d_out_p * 2
                   + (qkv_cols + d_out_p) * 4)
    interm = (rows * qkv_cols * 4          # fused QKV result (f32)
              + rows * qkv_cols * 2        # bf16 qp/kp/vp
              + 2 * bt * seq * seq * 4     # per-head scores + exp (f32)
              + rows * dv_all * 2          # bf16 head-output scratch
              + rows * d_out_p * 4)        # f32 output before cast
    return blocks + weights + interm


def _pick_batch_tile(bs, seq, d_model_p, d_out_p, dq, dv_all, n_heads,
                     n_act_inputs, return_attn, act_itemsize, budget,
                     row_target=512):
    """Smallest divisor of bs reaching >=row_target fused rows within budget,
    else the largest divisor that fits (attn block only charged if emitted)."""
    fitting = [bt for bt in range(1, bs + 1)
               if bs % bt == 0 and _step_vmem_bytes(
                   bt, seq, d_model_p, d_out_p, dq, dv_all, n_heads,
                   n_act_inputs, return_attn, act_itemsize) <= budget]
    if not fitting:
        return 1
    for bt in fitting:
        if bt * seq >= row_target:
            return bt
    return fitting[-1]


# ----------------------------------------------------------------------------
# Wrapper
# ----------------------------------------------------------------------------
def multihead_attention(Q, K, V, params, *, n_heads, d_k=None, d_v=None,
                        return_attn=False):
    bs, q_len, d_model = Q.shape
    d_k = d_model // n_heads if d_k is None else d_k
    d_v = d_model // n_heads if d_v is None else d_v
    # Module semantics: _ScaledDotProductAttention uses head_dim = d_model // n_heads
    # for the scale regardless of the d_k actually passed.
    scale = float((d_model // n_heads) ** -0.5)

    self_attn = (K is None or K is Q) and (V is None or V is Q)
    if K is None:
        K = Q
    if V is None:
        V = Q
    assert K.shape[1] == q_len and V.shape[1] == q_len, \
        "cross-length attention not supported"  # TODO(synk): unequal q/kv lengths

    wq, bq, wk, bk, wv, bv, wo, bo = params
    dq = n_heads * d_k
    dv_all = n_heads * d_v
    d_out = wo.shape[1]              # == d_model for the module

    # Fold the softmax scale into W_Q / b_q (constant-time, removes a per-step
    # rows*dq VPU multiply), and fuse the three projections into one weight.
    wqkv = jnp.concatenate([wq * scale, wk, wv], axis=1).astype(jnp.float32)
    bqkv = jnp.concatenate([bq * scale, bk, bv]).reshape(1, -1).astype(jnp.float32)

    # Lane-dense padding of the HBM-visible model dims (multiple of 128).
    d_model_p = _round_up(d_model, 128)
    d_out_p = _round_up(d_out, 128)
    if d_model_p != d_model:
        pad = d_model_p - d_model
        Q = jnp.pad(Q, ((0, 0), (0, 0), (0, pad)))
        if not self_attn:
            K = jnp.pad(K, ((0, 0), (0, 0), (0, pad)))
            V = jnp.pad(V, ((0, 0), (0, 0), (0, pad)))
        wqkv = jnp.pad(wqkv, ((0, pad), (0, 0)))      # zero rows -> same result
    if d_out_p != d_out:
        wo = jnp.pad(wo, ((0, 0), (0, d_out_p - d_out)))
        bo = jnp.pad(bo, (0, d_out_p - d_out))
    wqkv = wqkv.astype(jnp.bfloat16)
    wo = jnp.asarray(wo).astype(jnp.bfloat16)
    bo = jnp.asarray(bo).reshape(1, -1).astype(jnp.float32)

    act_itemsize = Q.dtype.itemsize
    n_act = 1 if self_attn else 3
    vmem_cap = _vmem_capacity_bytes()
    vmem_limit = min(int(vmem_cap * 0.9), 128 * 1024 * 1024)
    budget = int(vmem_limit * 0.7)
    bt = _pick_batch_tile(bs, q_len, d_model_p, d_out_p, dq, dv_all, n_heads,
                          n_act, return_attn, act_itemsize, budget)

    kernel = functools.partial(_mha_kernel, n_heads=n_heads, d_k=d_k, d_v=d_v,
                               self_attn=self_attn, return_attn=return_attn)

    act_spec = pl.BlockSpec((bt, q_len, d_model_p), lambda b: (b, 0, 0))

    qkv_cols = 2 * dq + dv_all
    flops = (2 * bs * q_len * d_model_p * qkv_cols
             + 2 * bs * n_heads * q_len * q_len * (d_k + d_v)
             + 2 * bs * q_len * dv_all * d_out_p)
    bytes_accessed = (n_act * bs * q_len * d_model_p * act_itemsize
                      + wqkv.size * 2 + wo.size * 2 + (bqkv.size + bo.size) * 4
                      + bs * q_len * d_out_p * act_itemsize
                      + (bs * n_heads * q_len * q_len * 2 if return_attn else 0))
    cost = pl.CostEstimate(flops=int(flops),
                           transcendentals=int(bs * n_heads * q_len * q_len),
                           bytes_accessed=int(bytes_accessed))

    def _build(single_buffer_weights):
        def wspec(shape):
            idx = lambda b, _n=len(shape): (0,) * _n
            if single_buffer_weights:
                return pl.BlockSpec(shape, idx, pipeline_mode=pl.Buffered(1))
            return pl.BlockSpec(shape, idx)

        in_specs = ([act_spec] if self_attn else [act_spec] * 3) + [
            wspec(wqkv.shape), wspec(bqkv.shape),
            wspec(wo.shape), wspec(bo.shape)]

        if return_attn:
            out_shape = (jax.ShapeDtypeStruct((bs, q_len, d_out_p), Q.dtype),
                         jax.ShapeDtypeStruct((bs, n_heads, q_len, q_len),
                                              jnp.bfloat16))
            out_specs = (pl.BlockSpec((bt, q_len, d_out_p), lambda b: (b, 0, 0)),
                         pl.BlockSpec((bt, n_heads, q_len, q_len),
                                      lambda b: (b, 0, 0, 0)))
        else:
            out_shape = jax.ShapeDtypeStruct((bs, q_len, d_out_p), Q.dtype)
            out_specs = pl.BlockSpec((bt, q_len, d_out_p), lambda b: (b, 0, 0))

        return pl.pallas_call(
            kernel,
            out_shape=out_shape,
            grid_spec=pltpu.PrefetchScalarGridSpec(
                num_scalar_prefetch=0,
                grid=(bs // bt,),
                in_specs=in_specs,
                out_specs=out_specs,
                scratch_shapes=[pltpu.VMEM((bt, q_len, dv_all), jnp.bfloat16)]),
            compiler_params=pltpu.CompilerParams(
                dimension_semantics=("parallel",),   # batch tiles independent
                vmem_limit_bytes=vmem_limit),
            cost_estimate=cost,
        )

    args = ([Q] if self_attn else [Q, K, V]) + [wqkv, bqkv, wo, bo]
    try:
        res = _build(True)(*args)
    except Exception:
        # Fallback if this Pallas build rejects single-buffered (Buffered(1)) specs.
        res = _build(False)(*args)

    if return_attn:
        out, attn = res
        return out[..., :d_out], attn
    return res[..., :d_out]


# ----------------------------------------------------------------------------
# Pure-JAX reference (f32 replica of the PyTorch forward, eval mode)
# ----------------------------------------------------------------------------
def _reference(Q, K, V, params, *, n_heads, d_k, d_v):
    bs, seq, d_model = Q.shape
    scale = (d_model // n_heads) ** -0.5
    wq, bq, wk, bk, wv, bv, wo, bo = params
    q = (Q @ wq + bq).reshape(bs, seq, n_heads, d_k).transpose(0, 2, 1, 3)
    k = (K @ wk + bk).reshape(bs, seq, n_heads, d_k).transpose(0, 2, 3, 1)
    v = (V @ wv + bv).reshape(bs, seq, n_heads, d_v).transpose(0, 2, 1, 3)
    scores = jnp.einsum('bhqd,bhdk->bhqk', q, k) * scale
    attn = jax.nn.softmax(scores, axis=-1)
    o = jnp.einsum('bhqk,bhkd->bhqd', attn, v)
    o = o.transpose(0, 2, 1, 3).reshape(bs, seq, n_heads * d_v)
    return o @ wo + bo, attn


if __name__ == "__main__":
    bs, seq, d_model, n_heads = 2, 8, 32, 4
    d_k = d_v = d_model // n_heads

    key = jax.random.PRNGKey(0)
    keys = jax.random.split(key, 12)

    Q = jax.random.normal(keys[0], (bs, seq, d_model), dtype=jnp.float32)

    def lin(kw, kb, fan_in, fan_out):
        bound = 1.0 / (fan_in ** 0.5)
        w = jax.random.uniform(kw, (fan_in, fan_out), jnp.float32, -bound, bound)
        b = jax.random.uniform(kb, (fan_out,), jnp.float32, -bound, bound)
        return w, b

    wq, bq = lin(keys[1], keys[2], d_model, n_heads * d_k)
    wk, bk = lin(keys[3], keys[4], d_model, n_heads * d_k)
    wv, bv = lin(keys[5], keys[6], d_model, n_heads * d_v)
    wo, bo = lin(keys[7], keys[8], n_heads * d_v, d_model)
    params = (wq, bq, wk, bk, wv, bv, wo, bo)

    # Self-attention (PatchTST path): with and without the attn output.
    out_a, attn_a = multihead_attention(Q, Q, Q, params, n_heads=n_heads,
                                        d_k=d_k, d_v=d_v, return_attn=True)
    out_b = multihead_attention(Q, Q, Q, params, n_heads=n_heads,
                                d_k=d_k, d_v=d_v, return_attn=False)
    # Cross-attention path (distinct K / V inputs).
    K2 = jax.random.normal(keys[9], (bs, seq, d_model), dtype=jnp.float32)
    V2 = jax.random.normal(keys[10], (bs, seq, d_model), dtype=jnp.float32)
    out_c = multihead_attention(Q, K2, V2, params, n_heads=n_heads,
                                d_k=d_k, d_v=d_v, return_attn=False)
    jax.block_until_ready((out_a, attn_a, out_b, out_c))

    out_exp, attn_exp = _reference(Q, Q, Q, params, n_heads=n_heads, d_k=d_k, d_v=d_v)
    out_exp_c, _ = _reference(Q, K2, V2, params, n_heads=n_heads, d_k=d_k, d_v=d_v)

    assert out_a.shape == (bs, seq, d_model)
    assert attn_a.shape == (bs, n_heads, seq, seq)
    assert out_b.shape == (bs, seq, d_model)
    assert out_c.shape == (bs, seq, d_model)
    # bf16 MXU inputs (f32 accumulation / f32 softmax) -> loosened tolerances.
    assert jnp.allclose(out_a, out_exp, atol=3e-2, rtol=3e-2)
    assert jnp.allclose(out_b, out_exp, atol=3e-2, rtol=3e-2)
    assert jnp.allclose(out_c, out_exp_c, atol=3e-2, rtol=3e-2)
    assert jnp.allclose(attn_a.astype(jnp.float32), attn_exp, atol=2e-2, rtol=2e-2)

    print("KERNEL_OK")
</pallas_src>

<mosaic_0001>
module attributes {stable_mosaic.version = 11 : i64} {
  func.func @_mha_kernel(%arg0: i32, %arg1: memref<2x8x128xf32, #tpu.memory_space<vmem>>, %arg2: memref<128x96xbf16, #tpu.memory_space<vmem>>, %arg3: memref<1x96xf32, #tpu.memory_space<vmem>>, %arg4: memref<32x128xbf16, #tpu.memory_space<vmem>>, %arg5: memref<1x128xf32, #tpu.memory_space<vmem>>, %arg6: memref<2x8x128xf32, #tpu.memory_space<vmem>>, %arg7: memref<2x4x8x8xbf16, #tpu.memory_space<vmem>>, %arg8: memref<2x8x32xbf16, #tpu.memory_space<vmem>>) attributes {dimension_semantics = [#tpu.dimension_semantics<parallel>], iteration_bounds = array<i64: 1>, scalar_prefetch = 0 : i64, scratch_operands = 1 : i64, tpu.core_type = #tpu.core_type<tc>, window_params = [{transform_indices = @transform_0, window_bounds = array<i64: 2, 8, 128>}, {pipeline_mode = #tpu.pipeline_mode<synchronous>, transform_indices = @transform_1, window_bounds = array<i64: 128, 96>}, {pipeline_mode = #tpu.pipeline_mode<synchronous>, transform_indices = @transform_2, window_bounds = array<i64: 1, 96>}, {pipeline_mode = #tpu.pipeline_mode<synchronous>, transform_indices = @transform_3, window_bounds = array<i64: 32, 128>}, {pipeline_mode = #tpu.pipeline_mode<synchronous>, transform_indices = @transform_4, window_bounds = array<i64: 1, 128>}, {transform_indices = @transform_5, window_bounds = array<i64: 2, 8, 128>}, {transform_indices = @transform_6, window_bounds = array<i64: 2, 4, 8, 8>}]} {
    %c0 = arith.constant 0 : index
    %c0_0 = arith.constant 0 : index
    %0 = vector.load %arg3[%c0, %c0_0] : memref<1x96xf32, #tpu.memory_space<vmem>>, vector<1x96xf32>
    %c0_1 = arith.constant 0 : index
    %c0_2 = arith.constant 0 : index
    %c0_3 = arith.constant 0 : index
    %1 = vector.load %arg1[%c0_1, %c0_2, %c0_3] : memref<2x8x128xf32, #tpu.memory_space<vmem>>, vector<2x8x128xf32>
    %2 = vector.shape_cast %1 : vector<2x8x128xf32> to vector<16x128xf32>
    %3 = arith.truncf %2 : vector<16x128xf32> to vector<16x128xbf16>
    %c0_4 = arith.constant 0 : index
    %c0_5 = arith.constant 0 : index
    %4 = vector.load %arg2[%c0_4, %c0_5] : memref<128x96xbf16, #tpu.memory_space<vmem>>, vector<128x96xbf16>
    %cst = arith.constant dense<0.000000e+00> : vector<16x96xf32>
    %5 = tpu.matmul %3, %4, %cst {dimension_numbers = #tpu.dot_dimension_numbers<[1], [0], [0], [1], [0, 0, 1, 1], [], []>} : vector<16x128xbf16>, vector<128x96xbf16>, vector<16x96xf32> -> vector<16x96xf32>
    %6 = vector.broadcast %0 : vector<1x96xf32> to vector<16x96xf32>
    %7 = arith.addf %5, %6 : vector<16x96xf32>
    %8 = vector.extract_strided_slice %7 {offsets = [0, 0], sizes = [16, 32], strides = [1, 1]} : vector<16x96xf32> to vector<16x32xf32>
    %9 = vector.extract_strided_slice %7 {offsets = [0, 32], sizes = [16, 32], strides = [1, 1]} : vector<16x96xf32> to vector<16x32xf32>
    %10 = vector.extract_strided_slice %7 {offsets = [0, 64], sizes = [16, 32], strides = [1, 1]} : vector<16x96xf32> to vector<16x32xf32>
    %11 = vector.shape_cast %8 : vector<16x32xf32> to vector<2x8x32xf32>
    %12 = arith.truncf %11 : vector<2x8x32xf32> to vector<2x8x32xbf16>
    %13 = vector.shape_cast %9 : vector<16x32xf32> to vector<2x8x32xf32>
    %14 = arith.truncf %13 : vector<2x8x32xf32> to vector<2x8x32xbf16>
    %15 = vector.shape_cast %10 : vector<16x32xf32> to vector<2x8x32xf32>
    %16 = arith.truncf %15 : vector<2x8x32xf32> to vector<2x8x32xbf16>
    %17 = vector.extract_strided_slice %12 {offsets = [0, 0, 0], sizes = [2, 8, 8], strides = [1, 1, 1]} : vector<2x8x32xbf16> to vector<2x8x8xbf16>
    %18 = vector.extract_strided_slice %14 {offsets = [0, 0, 0], sizes = [2, 8, 8], strides = [1, 1, 1]} : vector<2x8x32xbf16> to vector<2x8x8xbf16>
    %19 = vector.extract_strided_slice %16 {offsets = [0, 0, 0], sizes = [2, 8, 8], strides = [1, 1, 1]} : vector<2x8x32xbf16> to vector<2x8x8xbf16>
    "tpu.trace_start"() <{level = 10 : i32, message = "bqd,bkd->bqk"}> : () -> ()
    %cst_6 = arith.constant dense<0.000000e+00> : vector<2x8x8xf32>
    %20 = tpu.matmul %17, %18, %cst_6 {dimension_numbers = #tpu.dot_dimension_numbers<[2], [2], [1], [1], [0, 0, 0, 1, 1, 1], [0], [0]>} : vector<2x8x8xbf16>, vector<2x8x8xbf16>, vector<2x8x8xf32> -> vector<2x8x8xf32>
    "tpu.trace_stop"() : () -> ()
    %cst_7 = arith.constant dense<0xFF800000> : vector<2x8xf32>
    %21 = vector.multi_reduction <maximumf>, %20, %cst_7 [2] : vector<2x8x8xf32> to vector<2x8xf32>
    %22 = vector.shape_cast %21 : vector<2x8xf32> to vector<2x8x1xf32>
    %23 = vector.broadcast %22 : vector<2x8x1xf32> to vector<2x8x8xf32>
    %24 = arith.subf %20, %23 : vector<2x8x8xf32>
    %25 = math.exp %24 : vector<2x8x8xf32>
    %cst_8 = arith.constant dense<0.000000e+00> : vector<2x8xf32>
    %26 = vector.multi_reduction <add>, %25, %cst_8 [2] : vector<2x8x8xf32> to vector<2x8xf32>
    %27 = vector.shape_cast %26 : vector<2x8xf32> to vector<2x8x1xf32>
    %28 = tpu.reciprocal %27 {approx = true} : vector<2x8x1xf32> -> vector<2x8x1xf32>
    %29 = vector.broadcast %28 : vector<2x8x1xf32> to vector<2x8x8xf32>
    %30 = arith.mulf %25, %29 : vector<2x8x8xf32>
    %31 = arith.truncf %30 : vector<2x8x8xf32> to vector<2x8x8xbf16>
    %c0_9 = arith.constant 0 : index
    %c0_10 = arith.constant 0 : index
    %c0_11 = arith.constant 0 : index
    %c0_12 = arith.constant 0 : index
    %32 = vector.load %arg7[%c0_9, %c0_10, %c0_11, %c0_12] : memref<2x4x8x8xbf16, #tpu.memory_space<vmem>>, vector<2x1x8x8xbf16>
    %33 = vector.shape_cast %32 : vector<2x1x8x8xbf16> to vector<2x8x8xbf16>
    %34 = vector.shape_cast %31 : vector<2x8x8xbf16> to vector<2x1x8x8xbf16>
    tpu.vector_store %arg7[%c0_9, %c0_10, %c0_11, %c0_12], %34 {strides = array<i32>} : memref<2x4x8x8xbf16, #tpu.memory_space<vmem>>, vector<2x1x8x8xbf16>,
    %35 = arith.truncf %30 : vector<2x8x8xf32> to vector<2x8x8xbf16>
    "tpu.trace_start"() <{level = 10 : i32, message = "bqk,bkd->bqd"}> : () -> ()
    %cst_13 = arith.constant dense<0.000000e+00> : vector<2x8x8xf32>
    %36 = tpu.matmul %35, %19, %cst_13 {dimension_numbers = #tpu.dot_dimension_numbers<[2], [1], [1], [2], [0, 0, 0, 1, 1, 2], [0], [0]>} : vector<2x8x8xbf16>, vector<2x8x8xbf16>, vector<2x8x8xf32> -> vector<2x8x8xf32>
    "tpu.trace_stop"() : () -> ()
    %37 = arith.truncf %36 : vector<2x8x8xf32> to vector<2x8x8xbf16>
    %c0_14 = arith.constant 0 : index
    %c0_15 = arith.constant 0 : index
    %c0_16 = arith.constant 0 : index
    %38 = vector.load %arg8[%c0_14, %c0_15, %c0_16] : memref<2x8x32xbf16, #tpu.memory_space<vmem>>, vector<2x8x8xbf16>
    tpu.vector_store %arg8[%c0_14, %c0_15, %c0_16], %37 {strides = array<i32>} : memref<2x8x32xbf16, #tpu.memory_space<vmem>>, vector<2x8x8xbf16>,
    %39 = vector.extract_strided_slice %12 {offsets = [0, 0, 8], sizes = [2, 8, 8], strides = [1, 1, 1]} : vector<2x8x32xbf16> to vector<2x8x8xbf16>
    %40 = vector.extract_strided_slice %14 {offsets = [0, 0, 8], sizes = [2, 8, 8], strides = [1, 1, 1]} : vector<2x8x32xbf16> to vector<2x8x8xbf16>
    %41 = vector.extract_strided_slice %16 {offsets = [0, 0, 8], sizes = [2, 8, 8], strides = [1, 1, 1]} : vector<2x8x32xbf16> to vector<2x8x8xbf16>
    "tpu.trace_start"() <{level = 10 : i32, message = "bqd,bkd->bqk"}> : () -> ()
    %cst_17 = arith.constant dense<0.000000e+00> : vector<2x8x8xf32>
    %42 = tpu.matmul %39, %40, %cst_17 {dimension_numbers = #tpu.dot_dimension_numbers<[2], [2], [1], [1], [0, 0, 0, 1, 1, 1], [0], [0]>} : vector<2x8x8xbf16>, vector<2x8x8xbf16>, vector<2x8x8xf32> -> vector<2x8x8xf32>
    "tpu.trace_stop"() : () -> ()
    %cst_18 = arith.constant dense<0xFF800000> : vector<2x8xf32>
    %43 = vector.multi_reduction <maximumf>, %42, %cst_18 [2] : vector<2x8x8xf32> to vector<2x8xf32>
    %44 = vector.shape_cast %43 : vector<2x8xf32> to vector<2x8x1xf32>
    %45 = vector.broadcast %44 : vector<2x8x1xf32> to vector<2x8x8xf32>
    %46 = arith.subf %42, %45 : vector<2x8x8xf32>
    %47 = math.exp %46 : vector<2x8x8xf32>
    %cst_19 = arith.constant dense<0.000000e+00> : vector<2x8xf32>
    %48 = vector.multi_reduction <add>, %47, %cst_19 [2] : vector<2x8x8xf32> to vector<2x8xf32>
    %49 = vector.shape_cast %48 : vector<2x8xf32> to vector<2x8x1xf32>
    %50 = tpu.reciprocal %49 {approx = true} : vector<2x8x1xf32> -> vector<2x8x1xf32>
    %51 = vector.broadcast %50 : vector<2x8x1xf32> to vector<2x8x8xf32>
    %52 = arith.mulf %47, %51 : vector<2x8x8xf32>
    %53 = arith.truncf %52 : vector<2x8x8xf32> to vector<2x8x8xbf16>
    %c0_20 = arith.constant 0 : index
    %c1 = arith.constant 1 : index
    %c0_21 = arith.constant 0 : index
    %c0_22 = arith.constant 0 : index
    %54 = vector.load %arg7[%c0_20, %c1, %c0_21, %c0_22] : memref<2x4x8x8xbf16, #tpu.memory_space<vmem>>, vector<2x1x8x8xbf16>
    %55 = vector.shape_cast %54 : vector<2x1x8x8xbf16> to vector<2x8x8xbf16>
    %56 = vector.shape_cast %53 : vector<2x8x8xbf16> to vector<2x1x8x8xbf16>
    tpu.vector_store %arg7[%c0_20, %c1, %c0_21, %c0_22], %56 {strides = array<i32>} : memref<2x4x8x8xbf16, #tpu.memory_space<vmem>>, vector<2x1x8x8xbf16>,
    %57 = arith.truncf %52 : vector<2x8x8xf32> to vector<2x8x8xbf16>
    "tpu.trace_start"() <{level = 10 : i32, message = "bqk,bkd->bqd"}> : () -> ()
    %cst_23 = arith.constant dense<0.000000e+00> : vector<2x8x8xf32>
    %58 = tpu.matmul %57, %41, %cst_23 {dimension_numbers = #tpu.dot_dimension_numbers<[2], [1], [1], [2], [0, 0, 0, 1, 1, 2], [0], [0]>} : vector<2x8x8xbf16>, vector<2x8x8xbf16>, vector<2x8x8xf32> -> vector<2x8x8xf32>
    "tpu.trace_stop"() : () -> ()
    %59 = arith.truncf %58 : vector<2x8x8xf32> to vector<2x8x8xbf16>
    %c0_24 = arith.constant 0 : index
    %c0_25 = arith.constant 0 : index
    %c8 = arith.constant 8 : index
    %60 = vector.load %arg8[%c0_24, %c0_25, %c8] : memref<2x8x32xbf16, #tpu.memory_space<vmem>>, vector<2x8x8xbf16>
    tpu.vector_store %arg8[%c0_24, %c0_25, %c8], %59 {strides = array<i32>} : memref<2x8x32xbf16, #tpu.memory_space<vmem>>, vector<2x8x8xbf16>,
    %61 = vector.extract_strided_slice %12 {offsets = [0, 0, 16], sizes = [2, 8, 8], strides = [1, 1, 1]} : vector<2x8x32xbf16> to vector<2x8x8xbf16>
    %62 = vector.extract_strided_slice %14 {offsets = [0, 0, 16], sizes = [2, 8, 8], strides = [1, 1, 1]} : vector<2x8x32xbf16> to vector<2x8x8xbf16>
    %63 = vector.extract_strided_slice %16 {offsets = [0, 0, 16], sizes = [2, 8, 8], strides = [1, 1, 1]} : vector<2x8x32xbf16> to vector<2x8x8xbf16>
    "tpu.trace_start"() <{level = 10 : i32, message = "bqd,bkd->bqk"}> : () -> ()
    %cst_26 = arith.constant dense<0.000000e+00> : vector<2x8x8xf32>
    %64 = tpu.matmul %61, %62, %cst_26 {dimension_numbers = #tpu.dot_dimension_numbers<[2], [2], [1], [1], [0, 0, 0, 1, 1, 1], [0], [0]>} : vector<2x8x8xbf16>, vector<2x8x8xbf16>, vector<2x8x8xf32> -> vector<2x8x8xf32>
    "tpu.trace_stop"() : () -> ()
    %cst_27 = arith.constant dense<0xFF800000> : vector<2x8xf32>
    %65 = vector.multi_reduction <maximumf>, %64, %cst_27 [2] : vector<2x8x8xf32> to vector<2x8xf32>
    %66 = vector.shape_cast %65 : vector<2x8xf32> to vector<2x8x1xf32>
    %67 = vector.broadcast %66 : vector<2x8x1xf32> to vector<2x8x8xf32>
    %68 = arith.subf %64, %67 : vector<2x8x8xf32>
    %69 = math.exp %68 : vector<2x8x8xf32>
    %cst_28 = arith.constant dense<0.000000e+00> : vector<2x8xf32>
    %70 = vector.multi_reduction <add>, %69, %cst_28 [2] : vector<2x8x8xf32> to vector<2x8xf32>
    %71 = vector.shape_cast %70 : vector<2x8xf32> to vector<2x8x1xf32>
    %72 = tpu.reciprocal %71 {approx = true} : vector<2x8x1xf32> -> vector<2x8x1xf32>
    %73 = vector.broadcast %72 : vector<2x8x1xf32> to vector<2x8x8xf32>
    %74 = arith.mulf %69, %73 : vector<2x8x8xf32>
    %75 = arith.truncf %74 : vector<2x8x8xf32> to vector<2x8x8xbf16>
    %c0_29 = arith.constant 0 : index
    %c2 = arith.constant 2 : index
    %c0_30 = arith.constant 0 : index
    %c0_31 = arith.constant 0 : index
    %76 = vector.load %arg7[%c0_29, %c2, %c0_30, %c0_31] : memref<2x4x8x8xbf16, #tpu.memory_space<vmem>>, vector<2x1x8x8xbf16>
    %77 = vector.shape_cast %76 : vector<2x1x8x8xbf16> to vector<2x8x8xbf16>
    %78 = vector.shape_cast %75 : vector<2x8x8xbf16> to vector<2x1x8x8xbf16>
    tpu.vector_store %arg7[%c0_29, %c2, %c0_30, %c0_31], %78 {strides = array<i32>} : memref<2x4x8x8xbf16, #tpu.memory_space<vmem>>, vector<2x1x8x8xbf16>,
    %79 = arith.truncf %74 : vector<2x8x8xf32> to vector<2x8x8xbf16>
    "tpu.trace_start"() <{level = 10 : i32, message = "bqk,bkd->bqd"}> : () -> ()
    %cst_32 = arith.constant dense<0.000000e+00> : vector<2x8x8xf32>
    %80 = tpu.matmul %79, %63, %cst_32 {dimension_numbers = #tpu.dot_dimension_numbers<[2], [1], [1], [2], [0, 0, 0, 1, 1, 2], [0], [0]>} : vector<2x8x8xbf16>, vector<2x8x8xbf16>, vector<2x8x8xf32> -> vector<2x8x8xf32>
    "tpu.trace_stop"() : () -> ()
    %81 = arith.truncf %80 : vector<2x8x8xf32> to vector<2x8x8xbf16>
    %c0_33 = arith.constant 0 : index
    %c0_34 = arith.constant 0 : index
    %c16 = arith.constant 16 : index
    %82 = vector.load %arg8[%c0_33, %c0_34, %c16] : memref<2x8x32xbf16, #tpu.memory_space<vmem>>, vector<2x8x8xbf16>
    tpu.vector_store %arg8[%c0_33, %c0_34, %c16], %81 {strides = array<i32>} : memref<2x8x32xbf16, #tpu.memory_space<vmem>>, vector<2x8x8xbf16>,
    %83 = vector.extract_strided_slice %12 {offsets = [0, 0, 24], sizes = [2, 8, 8], strides = [1, 1, 1]} : vector<2x8x32xbf16> to vector<2x8x8xbf16>
    %84 = vector.extract_strided_slice %14 {offsets = [0, 0, 24], sizes = [2, 8, 8], strides = [1, 1, 1]} : vector<2x8x32xbf16> to vector<2x8x8xbf16>
    %85 = vector.extract_strided_slice %16 {offsets = [0, 0, 24], sizes = [2, 8, 8], strides = [1, 1, 1]} : vector<2x8x32xbf16> to vector<2x8x8xbf16>
    "tpu.trace_start"() <{level = 10 : i32, message = "bqd,bkd->bqk"}> : () -> ()
    %cst_35 = arith.constant dense<0.000000e+00> : vector<2x8x8xf32>
    %86 = tpu.matmul %83, %84, %cst_35 {dimension_numbers = #tpu.dot_dimension_numbers<[2], [2], [1], [1], [0, 0, 0, 1, 1, 1], [0], [0]>} : vector<2x8x8xbf16>, vector<2x8x8xbf16>, vector<2x8x8xf32> -> vector<2x8x8xf32>
    "tpu.trace_stop"() : () -> ()
    %cst_36 = arith.constant dense<0xFF800000> : vector<2x8xf32>
    %87 = vector.multi_reduction <maximumf>, %86, %cst_36 [2] : vector<2x8x8xf32> to vector<2x8xf32>
    %88 = vector.shape_cast %87 : vector<2x8xf32> to vector<2x8x1xf32>
    %89 = vector.broadcast %88 : vector<2x8x1xf32> to vector<2x8x8xf32>
    %90 = arith.subf %86, %89 : vector<2x8x8xf32>
    %91 = math.exp %90 : vector<2x8x8xf32>
    %cst_37 = arith.constant dense<0.000000e+00> : vector<2x8xf32>
    %92 = vector.multi_reduction <add>, %91, %cst_37 [2] : vector<2x8x8xf32> to vector<2x8xf32>
    %93 = vector.shape_cast %92 : vector<2x8xf32> to vector<2x8x1xf32>
    %94 = tpu.reciprocal %93 {approx = true} : vector<2x8x1xf32> -> vector<2x8x1xf32>
    %95 = vector.broadcast %94 : vector<2x8x1xf32> to vector<2x8x8xf32>
    %96 = arith.mulf %91, %95 : vector<2x8x8xf32>
    %97 = arith.truncf %96 : vector<2x8x8xf32> to vector<2x8x8xbf16>
    %c0_38 = arith.constant 0 : index
    %c3 = arith.constant 3 : index
    %c0_39 = arith.constant 0 : index
    %c0_40 = arith.constant 0 : index
    %98 = vector.load %arg7[%c0_38, %c3, %c0_39, %c0_40] : memref<2x4x8x8xbf16, #tpu.memory_space<vmem>>, vector<2x1x8x8xbf16>
    %99 = vector.shape_cast %98 : vector<2x1x8x8xbf16> to vector<2x8x8xbf16>
    %100 = vector.shape_cast %97 : vector<2x8x8xbf16> to vector<2x1x8x8xbf16>
    tpu.vector_store %arg7[%c0_38, %c3, %c0_39, %c0_40], %100 {strides = array<i32>} : memref<2x4x8x8xbf16, #tpu.memory_space<vmem>>, vector<2x1x8x8xbf16>,
    %101 = arith.truncf %96 : vector<2x8x8xf32> to vector<2x8x8xbf16>
    "tpu.trace_start"() <{level = 10 : i32, message = "bqk,bkd->bqd"}> : () -> ()
    %cst_41 = arith.constant dense<0.000000e+00> : vector<2x8x8xf32>
    %102 = tpu.matmul %101, %85, %cst_41 {dimension_numbers = #tpu.dot_dimension_numbers<[2], [1], [1], [2], [0, 0, 0, 1, 1, 2], [0], [0]>} : vector<2x8x8xbf16>, vector<2x8x8xbf16>, vector<2x8x8xf32> -> vector<2x8x8xf32>
    "tpu.trace_stop"() : () -> ()
    %103 = arith.truncf %102 : vector<2x8x8xf32> to vector<2x8x8xbf16>
    %c0_42 = arith.constant 0 : index
    %c0_43 = arith.constant 0 : index
    %c24 = arith.constant 24 : index
    %104 = vector.load %arg8[%c0_42, %c0_43, %c24] : memref<2x8x32xbf16, #tpu.memory_space<vmem>>, vector<2x8x8xbf16>
    tpu.vector_store %arg8[%c0_42, %c0_43, %c24], %103 {strides = array<i32>} : memref<2x8x32xbf16, #tpu.memory_space<vmem>>, vector<2x8x8xbf16>,
    %c0_44 = arith.constant 0 : index
    %c0_45 = arith.constant 0 : index
    %c0_46 = arith.constant 0 : index
    %105 = vector.load %arg8[%c0_44, %c0_45, %c0_46] : memref<2x8x32xbf16, #tpu.memory_space<vmem>>, vector<2x8x32xbf16>
    %106 = vector.shape_cast %105 : vector<2x8x32xbf16> to vector<16x32xbf16>
    %c0_47 = arith.constant 0 : index
    %c0_48 = arith.constant 0 : index
    %107 = vector.load %arg4[%c0_47, %c0_48] : memref<32x128xbf16, #tpu.memory_space<vmem>>, vector<32x128xbf16>
    %cst_49 = arith.constant dense<0.000000e+00> : vector<16x128xf32>
    %108 = tpu.matmul %106, %107, %cst_49 {dimension_numbers = #tpu.dot_dimension_numbers<[1], [0], [0], [1], [0, 0, 1, 1], [], []>} : vector<16x32xbf16>, vector<32x128xbf16>, vector<16x128xf32> -> vector<16x128xf32>
    %c0_50 = arith.constant 0 : index
    %c0_51 = arith.constant 0 : index
    %109 = vector.load %arg5[%c0_50, %c0_51] : memref<1x128xf32, #tpu.memory_space<vmem>>, vector<1x128xf32>
    %110 = vector.broadcast %109 : vector<1x128xf32> to vector<16x128xf32>
    %111 = arith.addf %108, %110 : vector<16x128xf32>
    %112 = vector.shape_cast %111 : vector<16x128xf32> to vector<2x8x128xf32>
    %c0_52 = arith.constant 0 : index
    %c0_53 = arith.constant 0 : index
    %c0_54 = arith.constant 0 : index
    %113 = vector.load %arg6[%c0_52, %c0_53, %c0_54] : memref<2x8x128xf32, #tpu.memory_space<vmem>>, vector<2x8x128xf32>
    tpu.vector_store %arg6[%c0_52, %c0_53, %c0_54], %112 {strides = array<i32>} : memref<2x8x128xf32, #tpu.memory_space<vmem>>, vector<2x8x128xf32>,
    return
  }
  func.func @transform_0(%arg0: i32) -> (i32, i32, i32) {
    %c0_i32 = arith.constant 0 : i32
    %c0_i32_0 = arith.constant 0 : i32
    %c0_i32_1 = arith.constant 0 : i32
    return %arg0, %c0_i32, %c0_i32_0 : i32, i32, i32
  }
  func.func @transform_1(%arg0: i32) -> (i32, i32) {
    %c0_i32 = arith.constant 0 : i32
    %c0_i32_0 = arith.constant 0 : i32
    %c0_i32_1 = arith.constant 0 : i32
    return %c0_i32, %c0_i32_0 : i32, i32
  }
  func.func @transform_2(%arg0: i32) -> (i32, i32) {
    %c0_i32 = arith.constant 0 : i32
    %c0_i32_0 = arith.constant 0 : i32
    %c0_i32_1 = arith.constant 0 : i32
    return %c0_i32, %c0_i32_0 : i32, i32
  }
  func.func @transform_3(%arg0: i32) -> (i32, i32) {
    %c0_i32 = arith.constant 0 : i32
    %c0_i32_0 = arith.constant 0 : i32
    %c0_i32_1 = arith.constant 0 : i32
    return %c0_i32, %c0_i32_0 : i32, i32
  }
  func.func @transform_4(%arg0: i32) -> (i32, i32) {
    %c0_i32 = arith.constant 0 : i32
    %c0_i32_0 = arith.constant 0 : i32
    %c0_i32_1 = arith.constant 0 : i32
    return %c0_i32, %c0_i32_0 : i32, i32
  }
  func.func @transform_5(%arg0: i32) -> (i32, i32, i32) {
    %c0_i32 = arith.constant 0 : i32
    %c0_i32_0 = arith.constant 0 : i32
    %c0_i32_1 = arith.constant 0 : i32
    return %arg0, %c0_i32, %c0_i32_0 : i32, i32, i32
  }
  func.func @transform_6(%arg0: i32) -> (i32, i32, i32, i32) {
    %c0_i32 = arith.constant 0 : i32
    %c0_i32_0 = arith.constant 0 : i32
    %c0_i32_1 = arith.constant 0 : i32
    %c0_i32_2 = arith.constant 0 : i32
    return %arg0, %c0_i32, %c0_i32_0, %c0_i32_1 : i32, i32, i32, i32
  }
}

module attributes {stable_mosaic.version = 11 : i64} {
  func.func @_mha_kernel(%arg0: i32, %arg1: memref<2x8x128xf32, #tpu.memory_space<vmem>>, %arg2: memref<128x96xbf16, #tpu.memory_space<vmem>>, %arg3: memref<1x96xf32, #tpu.memory_space<vmem>>, %arg4: memref<32x128xbf16, #tpu.memory_space<vmem>>, %arg5: memref<1x128xf32, #tpu.memory_space<vmem>>, %arg6: memref<2x8x128xf32, #tpu.memory_space<vmem>>, %arg7: memref<2x4x8x8xbf16, #tpu.memory_space<vmem>>, %arg8: memref<2x8x32xbf16, #tpu.memory_space<vmem>>) attributes {dimension_semantics = [#tpu.dimension_semantics<parallel>], iteration_bounds = array<i64: 1>, scalar_prefetch = 0 : i64, scratch_operands = 1 : i64, tpu.core_type = #tpu.core_type<tc>, window_params = [{transform_indices = @transform_0, window_bounds = array<i64: 2, 8, 128>}, {pipeline_mode = #tpu.pipeline_mode<synchronous>, transform_indices = @transform_1, window_bounds = array<i64: 128, 96>}, {pipeline_mode = #tpu.pipeline_mode<synchronous>, transform_indices = @transform_2, window_bounds = array<i64: 1, 96>}, {pipeline_mode = #tpu.pipeline_mode<synchronous>, transform_indices = @transform_3, window_bounds = array<i64: 32, 128>}, {pipeline_mode = #tpu.pipeline_mode<synchronous>, transform_indices = @transform_4, window_bounds = array<i64: 1, 128>}, {transform_indices = @transform_5, window_bounds = array<i64: 2, 8, 128>}, {transform_indices = @transform_6, window_bounds = array<i64: 2, 4, 8, 8>}]} {
    %c0 = arith.constant 0 : index
    %c0_0 = arith.constant 0 : index
    %0 = vector.load %arg3[%c0, %c0_0] : memref<1x96xf32, #tpu.memory_space<vmem>>, vector<1x96xf32>
    %c0_1 = arith.constant 0 : index
    %c0_2 = arith.constant 0 : index
    %c0_3 = arith.constant 0 : index
    %1 = vector.load %arg1[%c0_1, %c0_2, %c0_3] : memref<2x8x128xf32, #tpu.memory_space<vmem>>, vector<2x8x128xf32>
    %2 = vector.shape_cast %1 : vector<2x8x128xf32> to vector<16x128xf32>
    %3 = arith.truncf %2 : vector<16x128xf32> to vector<16x128xbf16>
    %c0_4 = arith.constant 0 : index
    %c0_5 = arith.constant 0 : index
    %4 = vector.load %arg2[%c0_4, %c0_5] : memref<128x96xbf16, #tpu.memory_space<vmem>>, vector<128x96xbf16>
    %cst = arith.constant dense<0.000000e+00> : vector<16x96xf32>
    %5 = tpu.matmul %3, %4, %cst {dimension_numbers = #tpu.dot_dimension_numbers<[1], [0], [0], [1], [0, 0, 1, 1], [], []>} : vector<16x128xbf16>, vector<128x96xbf16>, vector<16x96xf32> -> vector<16x96xf32>
    %6 = vector.broadcast %0 : vector<1x96xf32> to vector<16x96xf32>
    %7 = arith.addf %5, %6 : vector<16x96xf32>
    %8 = vector.extract_strided_slice %7 {offsets = [0, 0], sizes = [16, 32], strides = [1, 1]} : vector<16x96xf32> to vector<16x32xf32>
    %9 = vector.extract_strided_slice %7 {offsets = [0, 32], sizes = [16, 32], strides = [1, 1]} : vector<16x96xf32> to vector<16x32xf32>
    %10 = vector.extract_strided_slice %7 {offsets = [0, 64], sizes = [16, 32], strides = [1, 1]} : vector<16x96xf32> to vector<16x32xf32>
    %11 = vector.shape_cast %8 : vector<16x32xf32> to vector<2x8x32xf32>
    %12 = arith.truncf %11 : vector<2x8x32xf32> to vector<2x8x32xbf16>
    %13 = vector.shape_cast %9 : vector<16x32xf32> to vector<2x8x32xf32>
    %14 = arith.truncf %13 : vector<2x8x32xf32> to vector<2x8x32xbf16>
    %15 = vector.shape_cast %10 : vector<16x32xf32> to vector<2x8x32xf32>
    %16 = arith.truncf %15 : vector<2x8x32xf32> to vector<2x8x32xbf16>
    %17 = vector.extract_strided_slice %12 {offsets = [0, 0, 0], sizes = [2, 8, 8], strides = [1, 1, 1]} : vector<2x8x32xbf16> to vector<2x8x8xbf16>
    %18 = vector.extract_strided_slice %14 {offsets = [0, 0, 0], sizes = [2, 8, 8], strides = [1, 1, 1]} : vector<2x8x32xbf16> to vector<2x8x8xbf16>
    %19 = vector.extract_strided_slice %16 {offsets = [0, 0, 0], sizes = [2, 8, 8], strides = [1, 1, 1]} : vector<2x8x32xbf16> to vector<2x8x8xbf16>
    "tpu.trace_start"() <{level = 10 : i32, message = "bqd,bkd->bqk"}> : () -> ()
    %cst_6 = arith.constant dense<0.000000e+00> : vector<2x8x8xf32>
    %20 = tpu.matmul %17, %18, %cst_6 {dimension_numbers = #tpu.dot_dimension_numbers<[2], [2], [1], [1], [0, 0, 0, 1, 1, 1], [0], [0]>} : vector<2x8x8xbf16>, vector<2x8x8xbf16>, vector<2x8x8xf32> -> vector<2x8x8xf32>
    "tpu.trace_stop"() : () -> ()
    %cst_7 = arith.constant dense<0xFF800000> : vector<2x8xf32>
    %21 = vector.multi_reduction <maximumf>, %20, %cst_7 [2] : vector<2x8x8xf32> to vector<2x8xf32>
    %22 = vector.shape_cast %21 : vector<2x8xf32> to vector<2x8x1xf32>
    %23 = vector.broadcast %22 : vector<2x8x1xf32> to vector<2x8x8xf32>
    %24 = arith.subf %20, %23 : vector<2x8x8xf32>
    %25 = math.exp %24 : vector<2x8x8xf32>
    %cst_8 = arith.constant dense<0.000000e+00> : vector<2x8xf32>
    %26 = vector.multi_reduction <add>, %25, %cst_8 [2] : vector<2x8x8xf32> to vector<2x8xf32>
    %27 = vector.shape_cast %26 : vector<2x8xf32> to vector<2x8x1xf32>
    %28 = tpu.reciprocal %27 {approx = true} : vector<2x8x1xf32> -> vector<2x8x1xf32>
    %29 = vector.broadcast %28 : vector<2x8x1xf32> to vector<2x8x8xf32>
    %30 = arith.mulf %25, %29 : vector<2x8x8xf32>
    %31 = arith.truncf %30 : vector<2x8x8xf32> to vector<2x8x8xbf16>
    %c0_9 = arith.constant 0 : index
    %c0_10 = arith.constant 0 : index
    %c0_11 = arith.constant 0 : index
    %c0_12 = arith.constant 0 : index
    %32 = vector.load %arg7[%c0_9, %c0_10, %c0_11, %c0_12] : memref<2x4x8x8xbf16, #tpu.memory_space<vmem>>, vector<2x1x8x8xbf16>
    %33 = vector.shape_cast %32 : vector<2x1x8x8xbf16> to vector<2x8x8xbf16>
    %34 = vector.shape_cast %31 : vector<2x8x8xbf16> to vector<2x1x8x8xbf16>
    tpu.vector_store %arg7[%c0_9, %c0_10, %c0_11, %c0_12], %34 {strides = array<i32>} : memref<2x4x8x8xbf16, #tpu.memory_space<vmem>>, vector<2x1x8x8xbf16>,
    %35 = arith.truncf %30 : vector<2x8x8xf32> to vector<2x8x8xbf16>
    "tpu.trace_start"() <{level = 10 : i32, message = "bqk,bkd->bqd"}> : () -> ()
    %cst_13 = arith.constant dense<0.000000e+00> : vector<2x8x8xf32>
    %36 = tpu.matmul %35, %19, %cst_13 {dimension_numbers = #tpu.dot_dimension_numbers<[2], [1], [1], [2], [0, 0, 0, 1, 1, 2], [0], [0]>} : vector<2x8x8xbf16>, vector<2x8x8xbf16>, vector<2x8x8xf32> -> vector<2x8x8xf32>
    "tpu.trace_stop"() : () -> ()
    %37 = arith.truncf %36 : vector<2x8x8xf32> to vector<2x8x8xbf16>
    %c0_14 = arith.constant 0 : index
    %c0_15 = arith.constant 0 : index
    %c0_16 = arith.constant 0 : index
    %38 = vector.load %arg8[%c0_14, %c0_15, %c0_16] : memref<2x8x32xbf16, #tpu.memory_space<vmem>>, vector<2x8x8xbf16>
    tpu.vector_store %arg8[%c0_14, %c0_15, %c0_16], %37 {strides = array<i32>} : memref<2x8x32xbf16, #tpu.memory_space<vmem>>, vector<2x8x8xbf16>,
    %39 = vector.extract_strided_slice %12 {offsets = [0, 0, 8], sizes = [2, 8, 8], strides = [1, 1, 1]} : vector<2x8x32xbf16> to vector<2x8x8xbf16>
    %40 = vector.extract_strided_slice %14 {offsets = [0, 0, 8], sizes = [2, 8, 8], strides = [1, 1, 1]} : vector<2x8x32xbf16> to vector<2x8x8xbf16>
    %41 = vector.extract_strided_slice %16 {offsets = [0, 0, 8], sizes = [2, 8, 8], strides = [1, 1, 1]} : vector<2x8x32xbf16> to vector<2x8x8xbf16>
    "tpu.trace_start"() <{level = 10 : i32, message = "bqd,bkd->bqk"}> : () -> ()
    %cst_17 = arith.constant dense<0.000000e+00> : vector<2x8x8xf32>
    %42 = tpu.matmul %39, %40, %cst_17 {dimension_numbers = #tpu.dot_dimension_numbers<[2], [2], [1], [1], [0, 0, 0, 1, 1, 1], [0], [0]>} : vector<2x8x8xbf16>, vector<2x8x8xbf16>, vector<2x8x8xf32> -> vector<2x8x8xf32>
    "tpu.trace_stop"() : () -> ()
    %cst_18 = arith.constant dense<0xFF800000> : vector<2x8xf32>
    %43 = vector.multi_reduction <maximumf>, %42, %cst_18 [2] : vector<2x8x8xf32> to vector<2x8xf32>
    %44 = vector.shape_cast %43 : vector<2x8xf32> to vector<2x8x1xf32>
    %45 = vector.broadcast %44 : vector<2x8x1xf32> to vector<2x8x8xf32>
    %46 = arith.subf %42, %45 : vector<2x8x8xf32>
    %47 = math.exp %46 : vector<2x8x8xf32>
    %cst_19 = arith.constant dense<0.000000e+00> : vector<2x8xf32>
    %48 = vector.multi_reduction <add>, %47, %cst_19 [2] : vector<2x8x8xf32> to vector<2x8xf32>
    %49 = vector.shape_cast %48 : vector<2x8xf32> to vector<2x8x1xf32>
    %50 = tpu.reciprocal %49 {approx = true} : vector<2x8x1xf32> -> vector<2x8x1xf32>
    %51 = vector.broadcast %50 : vector<2x8x1xf32> to vector<2x8x8xf32>
    %52 = arith.mulf %47, %51 : vector<2x8x8xf32>
    %53 = arith.truncf %52 : vector<2x8x8xf32> to vector<2x8x8xbf16>
    %c0_20 = arith.constant 0 : index
    %c1 = arith.constant 1 : index
    %c0_21 = arith.constant 0 : index
    %c0_22 = arith.constant 0 : index
    %54 = vector.load %arg7[%c0_20, %c1, %c0_21, %c0_22] : memref<2x4x8x8xbf16, #tpu.memory_space<vmem>>, vector<2x1x8x8xbf16>
    %55 = vector.shape_cast %54 : vector<2x1x8x8xbf16> to vector<2x8x8xbf16>
    %56 = vector.shape_cast %53 : vector<2x8x8xbf16> to vector<2x1x8x8xbf16>
    tpu.vector_store %arg7[%c0_20, %c1, %c0_21, %c0_22], %56 {strides = array<i32>} : memref<2x4x8x8xbf16, #tpu.memory_space<vmem>>, vector<2x1x8x8xbf16>,
    %57 = arith.truncf %52 : vector<2x8x8xf32> to vector<2x8x8xbf16>
    "tpu.trace_start"() <{level = 10 : i32, message = "bqk,bkd->bqd"}> : () -> ()
    %cst_23 = arith.constant dense<0.000000e+00> : vector<2x8x8xf32>
    %58 = tpu.matmul %57, %41, %cst_23 {dimension_numbers = #tpu.dot_dimension_numbers<[2], [1], [1], [2], [0, 0, 0, 1, 1, 2], [0], [0]>} : vector<2x8x8xbf16>, vector<2x8x8xbf16>, vector<2x8x8xf32> -> vector<2x8x8xf32>
    "tpu.trace_stop"() : () -> ()
    %59 = arith.truncf %58 : vector<2x8x8xf32> to vector<2x8x8xbf16>
    %c0_24 = arith.constant 0 : index
    %c0_25 = arith.constant 0 : index
    %c8 = arith.constant 8 : index
    %60 = vector.load %arg8[%c0_24, %c0_25, %c8] : memref<2x8x32xbf16, #tpu.memory_space<vmem>>, vector<2x8x8xbf16>
    tpu.vector_store %arg8[%c0_24, %c0_25, %c8], %59 {strides = array<i32>} : memref<2x8x32xbf16, #tpu.memory_space<vmem>>, vector<2x8x8xbf16>,
    %61 = vector.extract_strided_slice %12 {offsets = [0, 0, 16], sizes = [2, 8, 8], strides = [1, 1, 1]} : vector<2x8x32xbf16> to vector<2x8x8xbf16>
    %62 = vector.extract_strided_slice %14 {offsets = [0, 0, 16], sizes = [2, 8, 8], strides = [1, 1, 1]} : vector<2x8x32xbf16> to vector<2x8x8xbf16>
    %63 = vector.extract_strided_slice %16 {offsets = [0, 0, 16], sizes = [2, 8, 8], strides = [1, 1, 1]} : vector<2x8x32xbf16> to vector<2x8x8xbf16>
    "tpu.trace_start"() <{level = 10 : i32, message = "bqd,bkd->bqk"}> : () -> ()
    %cst_26 = arith.constant dense<0.000000e+00> : vector<2x8x8xf32>
    %64 = tpu.matmul %61, %62, %cst_26 {dimension_numbers = #tpu.dot_dimension_numbers<[2], [2], [1], [1], [0, 0, 0, 1, 1, 1], [0], [0]>} : vector<2x8x8xbf16>, vector<2x8x8xbf16>, vector<2x8x8xf32> -> vector<2x8x8xf32>
    "tpu.trace_stop"() : () -> ()
    %cst_27 = arith.constant dense<0xFF800000> : vector<2x8xf32>
    %65 = vector.multi_reduction <maximumf>, %64, %cst_27 [2] : vector<2x8x8xf32> to vector<2x8xf32>
    %66 = vector.shape_cast %65 : vector<2x8xf32> to vector<2x8x1xf32>
    %67 = vector.broadcast %66 : vector<2x8x1xf32> to vector<2x8x8xf32>
    %68 = arith.subf %64, %67 : vector<2x8x8xf32>
    %69 = math.exp %68 : vector<2x8x8xf32>
    %cst_28 = arith.constant dense<0.000000e+00> : vector<2x8xf32>
    %70 = vector.multi_reduction <add>, %69, %cst_28 [2] : vector<2x8x8xf32> to vector<2x8xf32>
    %71 = vector.shape_cast %70 : vector<2x8xf32> to vector<2x8x1xf32>
    %72 = tpu.reciprocal %71 {approx = true} : vector<2x8x1xf32> -> vector<2x8x1xf32>
    %73 = vector.broadcast %72 : vector<2x8x1xf32> to vector<2x8x8xf32>
    %74 = arith.mulf %69, %73 : vector<2x8x8xf32>
    %75 = arith.truncf %74 : vector<2x8x8xf32> to vector<2x8x8xbf16>
    %c0_29 = arith.constant 0 : index
    %c2 = arith.constant 2 : index
    %c0_30 = arith.constant 0 : index
    %c0_31 = arith.constant 0 : index
    %76 = vector.load %arg7[%c0_29, %c2, %c0_30, %c0_31] : memref<2x4x8x8xbf16, #tpu.memory_space<vmem>>, vector<2x1x8x8xbf16>
    %77 = vector.shape_cast %76 : vector<2x1x8x8xbf16> to vector<2x8x8xbf16>
    %78 = vector.shape_cast %75 : vector<2x8x8xbf16> to vector<2x1x8x8xbf16>
    tpu.vector_store %arg7[%c0_29, %c2, %c0_30, %c0_31], %78 {strides = array<i32>} : memref<2x4x8x8xbf16, #tpu.memory_space<vmem>>, vector<2x1x8x8xbf16>,
    %79 = arith.truncf %74 : vector<2x8x8xf32> to vector<2x8x8xbf16>
    "tpu.trace_start"() <{level = 10 : i32, message = "bqk,bkd->bqd"}> : () -> ()
    %cst_32 = arith.constant dense<0.000000e+00> : vector<2x8x8xf32>
    %80 = tpu.matmul %79, %63, %cst_32 {dimension_numbers = #tpu.dot_dimension_numbers<[2], [1], [1], [2], [0, 0, 0, 1, 1, 2], [0], [0]>} : vector<2x8x8xbf16>, vector<2x8x8xbf16>, vector<2x8x8xf32> -> vector<2x8x8xf32>
    "tpu.trace_stop"() : () -> ()
    %81 = arith.truncf %80 : vector<2x8x8xf32> to vector<2x8x8xbf16>
    %c0_33 = arith.constant 0 : index
    %c0_34 = arith.constant 0 : index
    %c16 = arith.constant 16 : index
    %82 = vector.load %arg8[%c0_33, %c0_34, %c16] : memref<2x8x32xbf16, #tpu.memory_space<vmem>>, vector<2x8x8xbf16>
    tpu.vector_store %arg8[%c0_33, %c0_34, %c16], %81 {strides = array<i32>} : memref<2x8x32xbf16, #tpu.memory_space<vmem>>, vector<2x8x8xbf16>,
    %83 = vector.extract_strided_slice %12 {offsets = [0, 0, 24], sizes = [2, 8, 8], strides = [1, 1, 1]} : vector<2x8x32xbf16> to vector<2x8x8xbf16>
    %84 = vector.extract_strided_slice %14 {offsets = [0, 0, 24], sizes = [2, 8, 8], strides = [1, 1, 1]} : vector<2x8x32xbf16> to vector<2x8x8xbf16>
    %85 = vector.extract_strided_slice %16 {offsets = [0, 0, 24], sizes = [2, 8, 8], strides = [1, 1, 1]} : vector<2x8x32xbf16> to vector<2x8x8xbf16>
    "tpu.trace_start"() <{level = 10 : i32, message = "bqd,bkd->bqk"}> : () -> ()
    %cst_35 = arith.constant dense<0.000000e+00> : vector<2x8x8xf32>
    %86 = tpu.matmul %83, %84, %cst_35 {dimension_numbers = #tpu.dot_dimension_numbers<[2], [2], [1], [1], [0, 0, 0, 1, 1, 1], [0], [0]>} : vector<2x8x8xbf16>, vector<2x8x8xbf16>, vector<2x8x8xf32> -> vector<2x8x8xf32>
    "tpu.trace_stop"() : () -> ()
    %cst_36 = arith.constant dense<0xFF800000> : vector<2x8xf32>
    %87 = vector.multi_reduction <maximumf>, %86, %cst_36 [2] : vector<2x8x8xf32> to vector<2x8xf32>
    %88 = vector.shape_cast %87 : vector<2x8xf32> to vector<2x8x1xf32>
    %89 = vector.broadcast %88 : vector<2x8x1xf32> to vector<2x8x8xf32>
    %90 = arith.subf %86, %89 : vector<2x8x8xf32>
    %91 = math.exp %90 : vector<2x8x8xf32>
    %cst_37 = arith.constant dense<0.000000e+00> : vector<2x8xf32>
    %92 = vector.multi_reduction <add>, %91, %cst_37 [2] : vector<2x8x8xf32> to vector<2x8xf32>
    %93 = vector.shape_cast %92 : vector<2x8xf32> to vector<2x8x1xf32>
    %94 = tpu.reciprocal %93 {approx = true} : vector<2x8x1xf32> -> vector<2x8x1xf32>
    %95 = vector.broadcast %94 : vector<2x8x1xf32> to vector<2x8x8xf32>
    %96 = arith.mulf %91, %95 : vector<2x8x8xf32>
    %97 = arith.truncf %96 : vector<2x8x8xf32> to vector<2x8x8xbf16>
    %c0_38 = arith.constant 0 : index
    %c3 = arith.constant 3 : index
    %c0_39 = arith.constant 0 : index
    %c0_40 = arith.constant 0 : index
    %98 = vector.load %arg7[%c0_38, %c3, %c0_39, %c0_40] : memref<2x4x8x8xbf16, #tpu.memory_space<vmem>>, vector<2x1x8x8xbf16>
    %99 = vector.shape_cast %98 : vector<2x1x8x8xbf16> to vector<2x8x8xbf16>
    %100 = vector.shape_cast %97 : vector<2x8x8xbf16> to vector<2x1x8x8xbf16>
    tpu.vector_store %arg7[%c0_38, %c3, %c0_39, %c0_40], %100 {strides = array<i32>} : memref<2x4x8x8xbf16, #tpu.memory_space<vmem>>, vector<2x1x8x8xbf16>,
    %101 = arith.truncf %96 : vector<2x8x8xf32> to vector<2x8x8xbf16>
    "tpu.trace_start"() <{level = 10 : i32, message = "bqk,bkd->bqd"}> : () -> ()
    %cst_41 = arith.constant dense<0.000000e+00> : vector<2x8x8xf32>
    %102 = tpu.matmul %101, %85, %cst_41 {dimension_numbers = #tpu.dot_dimension_numbers<[2], [1], [1], [2], [0, 0, 0, 1, 1, 2], [0], [0]>} : vector<2x8x8xbf16>, vector<2x8x8xbf16>, vector<2x8x8xf32> -> vector<2x8x8xf32>
    "tpu.trace_stop"() : () -> ()
    %103 = arith.truncf %102 : vector<2x8x8xf32> to vector<2x8x8xbf16>
    %c0_42 = arith.constant 0 : index
    %c0_43 = arith.constant 0 : index
    %c24 = arith.constant 24 : index
    %104 = vector.load %arg8[%c0_42, %c0_43, %c24] : memref<2x8x32xbf16, #tpu.memory_space<vmem>>, vector<2x8x8xbf16>
    tpu.vector_store %arg8[%c0_42, %c0_43, %c24], %103 {strides = array<i32>} : memref<2x8x32xbf16, #tpu.memory_space<vmem>>, vector<2x8x8xbf16>,
    %c0_44 = arith.constant 0 : index
    %c0_45 = arith.constant 0 : index
    %c0_46 = arith.constant 0 : index
    %105 = vector.load %arg8[%c0_44, %c0_45, %c0_46] : memref<2x8x32xbf16, #tpu.memory_space<vmem>>, vector<2x8x32xbf16>
    %106 = vector.shape_cast %105 : vector<2x8x32xbf16> to vector<16x32xbf16>
    %c0_47 = arith.constant 0 : index
    %c0_48 = arith.constant 0 : index
    %107 = vector.load %arg4[%c0_47, %c0_48] : memref<32x128xbf16, #tpu.memory_space<vmem>>, vector<32x128xbf16>
    %cst_49 = arith.constant dense<0.000000e+00> : vector<16x128xf32>
    %108 = tpu.matmul %106, %107, %cst_49 {dimension_numbers = #tpu.dot_dimension_numbers<[1], [0], [0], [1], [0, 0, 1, 1], [], []>} : vector<16x32xbf16>, vector<32x128xbf16>, vector<16x128xf32> -> vector<16x128xf32>
    %c0_50 = arith.constant 0 : index
    %c0_51 = arith.constant 0 : index
    %109 = vector.load %arg5[%c0_50, %c0_51] : memref<1x128xf32, #tpu.memory_space<vmem>>, vector<1x128xf32>
    %110 = vector.broadcast %109 : vector<1x128xf32> to vector<16x128xf32>
    %111 = arith.addf %108, %110 : vector<16x128xf32>
    %112 = vector.shape_cast %111 : vector<16x128xf32> to vector<2x8x128xf32>
    %c0_52 = arith.constant 0 : index
    %c0_53 = arith.constant 0 : index
    %c0_54 = arith.constant 0 : index
    %113 = vector.load %arg6[%c0_52, %c0_53, %c0_54] : memref<2x8x128xf32, #tpu.memory_space<vmem>>, vector<2x8x128xf32>
    tpu.vector_store %arg6[%c0_52, %c0_53, %c0_54], %112 {strides = array<i32>} : memref<2x8x128xf32, #tpu.memory_space<vmem>>, vector<2x8x128xf32>,
    return
  }
  func.func @transform_0(%arg0: i32) -> (i32, i32, i32) {
    %c0_i32 = arith.constant 0 : i32
    %c0_i32_0 = arith.constant 0 : i32
    %c0_i32_1 = arith.constant 0 : i32
    return %arg0, %c0_i32, %c0_i32_0 : i32, i32, i32
  }
  func.func @transform_1(%arg0: i32) -> (i32, i32) {
    %c0_i32 = arith.constant 0 : i32
    %c0_i32_0 = arith.constant 0 : i32
    %c0_i32_1 = arith.constant 0 : i32
    return %c0_i32, %c0_i32_0 : i32, i32
  }
  func.func @transform_2(%arg0: i32) -> (i32, i32) {
    %c0_i32 = arith.constant 0 : i32
    %c0_i32_0 = arith.constant 0 : i32
    %c0_i32_1 = arith.constant 0 : i32
    return %c0_i32, %c0_i32_0 : i32, i32
  }
  func.func @transform_3(%arg0: i32) -> (i32, i32) {
    %c0_i32 = arith.constant 0 : i32
    %c0_i32_0 = arith.constant 0 : i32
    %c0_i32_1 = arith.constant 0 : i32
    return %c0_i32, %c0_i32_0 : i32, i32
  }
  func.func @transform_4(%arg0: i32) -> (i32, i32) {
    %c0_i32 = arith.constant 0 : i32
    %c0_i32_0 = arith.constant 0 : i32
    %c0_i32_1 = arith.constant 0 : i32
    return %c0_i32, %c0_i32_0 : i32, i32
  }
  func.func @transform_5(%arg0: i32) -> (i32, i32, i32) {
    %c0_i32 = arith.constant 0 : i32
    %c0_i32_0 = arith.constant 0 : i32
    %c0_i32_1 = arith.constant 0 : i32
    return %arg0, %c0_i32, %c0_i32_0 : i32, i32, i32
  }
  func.func @transform_6(%arg0: i32) -> (i32, i32, i32, i32) {
    %c0_i32 = arith.constant 0 : i32
    %c0_i32_0 = arith.constant 0 : i32
    %c0_i32_1 = arith.constant 0 : i32
    %c0_i32_2 = arith.constant 0 : i32
    return %arg0, %c0_i32, %c0_i32_0, %c0_i32_1 : i32, i32, i32, i32
  }
}

</mosaic_0001>

<llo_original>
// kernel: tpu_custom_call.1
$region0: #{tpu_custom_call.1}
  #allocation0 [shape = 'u32[]', space=smem, size = 0x4, offset = 0x4, fixed_abs, tag = 'smem constant byte address 0x4 - core index']
  #allocation1 [shape = 'u32[72,128]{1,0:T(1,128)}', space=vmem, size = 0x9000, scoped, tag = 'internal scratch']
  #allocation2 [shape = 'bf16[2,8,32]{2,1,0:T(8,128)(2,1)}', space=vmem, size = 0x1000, scoped, tag = 'scratch operand']
  %s0 = inlined_call_operand.vmem [shape: f32[2,8,128], index: 0, kind: input, shape index: {}]
  %s1 = inlined_call_operand.vmem [shape: bf16[128,96], index: 1, kind: input, shape index: {}]
  %s2 = inlined_call_operand.vmem [shape: f32[1,96], index: 2, kind: input, shape index: {}]
  %s3 = inlined_call_operand.vmem [shape: bf16[32,128], index: 3, kind: input, shape index: {}]
  %s4 = inlined_call_operand.vmem [shape: f32[1,128], index: 4, kind: input, shape index: {}]
  %s5 = inlined_call_operand.hbm [shape: f32[2,8,128], index: 5, kind: output, shape index: {0}]
  %s6 = inlined_call_operand.hbm [shape: bf16[2,4,8,8], index: 6, kind: output, shape index: {1}]
  %7 = xla_tuple %s5, %s6
  %s8 = sld [smem:[#allocation0]]
  $region38: #{tpu_custom_call.1} parent=0
    _
  %s10 = ssub.s32 1, %s8
  %s11 = scalar_select 0, %s10, %s8
  $region1: #{tpu_custom_call.1} parent=0
    #allocation3 [shape = 'u8[8192]{0}', space=vmem, size = 0x2000, scoped, tag = 'output window, operand 0, single buffered']
    #allocation4 [shape = 's32[1]{0}', space=sflag, size = 0x4, scoped, tag = 'scoped memory for tpu_custom_call.1']
    #allocation5 [shape = 'u8[16384]{0}', space=vmem, size = 0x4000, scoped, tag = 'output window, operand 1, single buffered']
    #allocation6 [shape = 's32[1]{0}', space=sflag, size = 0x4, scoped, tag = 'scoped memory for tpu_custom_call.1']
    %12 = vsyncpa [#allocation4], 0
    %13 = vsyncpa [#allocation6], 0
    // Predicated region
    $region2: #{tpu_custom_call.1} parent=1 // pred_check
      _
    $region3: #{tpu_custom_call.1} parent=1 // pred_check_branch
      %15 = sbr.rel (0) target = $region5
    $region4: #{tpu_custom_call.1} parent=1 // pred_region
      _
    $region5: #{tpu_custom_call.1} parent=1 // pred_fallthru
      _
    // Predicated region
    $region6: #{tpu_custom_call.1} parent=1 // pred_check
      _
    $region7: #{tpu_custom_call.1} parent=1 // pred_check_branch
      %17 = sbr.rel (0) target = $region9
    $region8: #{tpu_custom_call.1} parent=1 // pred_region
      _
    $region9: #{tpu_custom_call.1} parent=1 // pred_fallthru
      _
    // Predicated region
    $region10: #{tpu_custom_call.1} parent=1 // pred_check
      _
    $region11: #{tpu_custom_call.1} parent=1 // pred_check_branch
      %19 = sbr.rel (0) target = $region13
    $region12: #{tpu_custom_call.1} parent=1 // pred_region
      _
    $region13: #{tpu_custom_call.1} parent=1 // pred_fallthru
      _
    // Predicated region
    $region14: #{tpu_custom_call.1} parent=1 // pred_check
      _
    $region15: #{tpu_custom_call.1} parent=1 // pred_check_branch
      %21 = sbr.rel (0) target = $region17
    $region16: #{tpu_custom_call.1} parent=1 // pred_region
      _
    $region17: #{tpu_custom_call.1} parent=1 // pred_fallthru
      _
    // Predicated region
    $region18: #{tpu_custom_call.1} parent=1 // pred_check
      _
    $region19: #{tpu_custom_call.1} parent=1 // pred_check_branch
      %23 = sbr.rel (0) target = $region21
    $region20: #{tpu_custom_call.1} parent=1 // pred_region
      _
    $region21: #{tpu_custom_call.1} parent=1 // pred_fallthru
      _
    %v25 = vld [vmem:[%s2] sm:$0x1]
    %v26 = vld [vmem:[%s0] sm:$0xff]
    %v27 = vld [vmem:[%s0 + $0x8] sm:$0xff]
    %v28 = vpack.c.bf16 %v27, %v26
    %v29 = vld [vmem:[%s1] sm:$0xf]
    %v30 = vld [vmem:[%s1 + $0x4] sm:$0xf]
    %v31 = vld [vmem:[%s1 + $0x8] sm:$0xf]
    %v32 = vld [vmem:[%s1 + $0xc] sm:$0xf]
    %v33 = vld [vmem:[%s1 + $0x10] sm:$0xf]
    %v34 = vld [vmem:[%s1 + $0x14] sm:$0xf]
    %v35 = vld [vmem:[%s1 + $0x18] sm:$0xf]
    %v36 = vld [vmem:[%s1 + $0x1c] sm:$0xf]
    %v37 = vld [vmem:[%s1 + $0x20] sm:$0xf]
    %v38 = vld [vmem:[%s1 + $0x24] sm:$0xf]
    %v39 = vld [vmem:[%s1 + $0x28] sm:$0xf]
    %v40 = vld [vmem:[%s1 + $0x2c] sm:$0xf]
    %v41 = vld [vmem:[%s1 + $0x30] sm:$0xf]
    %v42 = vld [vmem:[%s1 + $0x34] sm:$0xf]
    %v43 = vld [vmem:[%s1 + $0x38] sm:$0xf]
    %v44 = vld [vmem:[%s1 + $0x3c] sm:$0xf]
    %v46 = vperm.slane %v25, 0
    %v64 = vunpack.c.l.b16 %v29
    %v65 = vunpack.c.l.b16 %v30
    %v66 = vunpack.c.l.b16 %v31
    %v67 = vunpack.c.l.b16 %v32
    %v68 = vunpack.c.l.b16 %v33
    %v69 = vunpack.c.l.b16 %v34
    %v70 = vunpack.c.l.b16 %v35
    %v71 = vunpack.c.l.b16 %v36
    %v72 = vunpack.c.l.b16 %v37
    %v73 = vunpack.c.l.b16 %v38
    %v74 = vunpack.c.l.b16 %v39
    %v75 = vunpack.c.l.b16 %v40
    %v76 = vunpack.c.l.b16 %v41
    %v77 = vunpack.c.l.b16 %v42
    %v78 = vunpack.c.l.b16 %v43
    %v79 = vunpack.c.l.b16 %v44
    %v80 = vpack.c.b16 %v65, %v64
    %v81 = vpack.c.b16 %v67, %v66
    %v82 = vpack.c.b16 %v69, %v68
    %v83 = vpack.c.b16 %v71, %v70
    %v84 = vpack.c.b16 %v73, %v72
    %v85 = vpack.c.b16 %v75, %v74
    %v86 = vpack.c.b16 %v77, %v76
    %v87 = vpack.c.b16 %v79, %v78
    %96 = vmatpush.bf16.msra.mxu0 %v87
    %97 = vmatpush.bf16.msra.mxu0 %v86
    %98 = vmatpush.bf16.msra.mxu0 %v85
    %99 = vmatpush.bf16.msra.mxu0 %v84
    %100 = vmatpush.bf16.msra.mxu0 %v83
    %101 = vmatpush.bf16.msra.mxu0 %v82
    %102 = vmatpush.bf16.msra.mxu0 %v81
    %103 = vmatpush.bf16.msra.mxu0 %v80
    %104 = vmatmul.bf16.gmra.mxu0 %v28
    %v105 = vpop.f32.mrf.mxu0
    %v106 = vadd.f32 %v46, %v105
    %v107 = vpop.f32.mrf.mxu0
    %v108 = vadd.f32 %v46, %v107
    %109 = vdwg.mxu0
    %v110 = vpack.c.bf16 %v106, %v106
    %v111 = vpack.c.bf16 %v108, %v108
    %v113 = vunpack.c.l.b16 %v110
    %v114 = vpack.c.b16 %v113, %v113
    %115 = vrot.lane.b32.xlu0 %v114, 96
    %v116 = vpop.permute.xlu0 %115
    %vm117 = vcmask 64512
    %v119 = vsel %vm117, %v110, 0
    %v122 = vsel %vm117, %v116, 0
    %124 = vmatpush.bf16.xpose.msra.mxu0 0
    %125 = vmatpush.bf16.xpose.msra.mxu0 0
    %126 = vmatpush.bf16.xpose.msra.mxu0 0
    %127 = vmatpush.bf16.xpose.msra.mxu0 0
    %128 = vmatpush.bf16.xpose.msra.mxu0 0
    %129 = vmatpush.bf16.xpose.msra.mxu0 0
    %130 = vmatpush.bf16.xpose.msra.mxu0 0
    %131 = vmatpush.bf16.xpose.msra.mxu0 %v122
    %132 = vmatmul.bf16.gmra.mxu0 %v119
    %v133 = vpop.f32.mrf.mxu0
    %v134 = vadd.f32 0.0, %v133
    %v135 = vpop.f32.mrf.mxu0
    %136 = vdwg.mxu0
    %v138 = vunpack.c.l.b16 %v111
    %v139 = vpack.c.b16 %v138, %v138
    %140 = vrot.lane.b32.xlu0 %v139, 96
    %v141 = vpop.permute.xlu0 %140
    %v143 = vsel %vm117, %v111, 0
    %v146 = vsel %vm117, %v141, 0
    %148 = vmatpush.bf16.xpose.msra.mxu0 0
    %149 = vmatpush.bf16.xpose.msra.mxu0 0
    %150 = vmatpush.bf16.xpose.msra.mxu0 0
    %151 = vmatpush.bf16.xpose.msra.mxu0 0
    %152 = vmatpush.bf16.xpose.msra.mxu0 0
    %153 = vmatpush.bf16.xpose.msra.mxu0 0
    %154 = vmatpush.bf16.xpose.msra.mxu0 0
    %155 = vmatpush.bf16.xpose.msra.mxu0 %v146
    %156 = vmatmul.bf16.gmra.mxu0 %v143
    %v157 = vpop.f32.mrf.mxu0
    %v158 = vadd.f32 0.0, %v157
    %v159 = vpop.f32.mrf.mxu0
    %160 = vdwg.mxu0
    %v161 = vsel %vm117, %v134, -inf
    %162 = vmax.xlane.f32.xlu0 %v161
    %v163 = vpop.xlane.xlu0 %162
    %v164 = vsel %vm117, %v158, -inf
    %165 = vmax.xlane.f32.xlu0 %v164
    %v166 = vpop.xlane.xlu0 %165
    %v167 = vsub.f32 %v134, %v163
    %v168 = vsub.f32 %v158, %v166
    %v169 = vmul.f32 %v167, 1.442695
    %v170 = vpow.pop %v169
    %v171 = vmul.f32 %v168, 1.442695
    %v172 = vpow.pop %v171
    %v173 = vsel %vm117, %v170, 0.0
    %174 = vadd.xlane.f32.xlu0 %v173
    %v175 = vpop.xlane.xlu0 %174
    %v176 = vsel %vm117, %v172, 0.0
    %177 = vadd.xlane.f32.xlu0 %v176
    %v178 = vpop.xlane.xlu0 %177
    %v179 = vrcp.pop %v175
    %v180 = vrcp.pop %v178
    %v181 = vmul.f32 %v170, %v179
    %v182 = vmul.f32 %v172, %v180
    %v183 = vpack.c.bf16 %v181, %v181
    %v184 = vpack.c.bf16 %v182, %v182
    %vm185 = vcmask 60416
    %186 = vst.msk [vmem:[#allocation5] sm:$0xf] %vm185, %v183
    %187 = vst.msk [vmem:[#allocation5 + $0x10] sm:$0xf] %vm185, %v184
    %188 = vrot.lane.b32.xlu0 %v114, 64
    %v189 = vpop.permute.xlu0 %188
    %v191 = vsel %vm117, %v183, 0
    %vm193 = vcmask 1043456
    %v195 = vsel %vm193, %v189, 0
    %197 = vmatpush.bf16.msra.mxu0 0
    %198 = vmatpush.bf16.msra.mxu0 0
    %199 = vmatpush.bf16.msra.mxu0 0
    %200 = vmatpush.bf16.msra.mxu0 0
    %201 = vmatpush.bf16.msra.mxu0 0
    %202 = vmatpush.bf16.msra.mxu0 0
    %203 = vmatpush.bf16.msra.mxu0 0
    %204 = vmatpush.bf16.msra.mxu0 %v195
    %205 = vmatmul.bf16.gmra.mxu0 %v191
    %v206 = vpop.f32.mrf.mxu0
    %v207 = vadd.f32 0.0, %v206
    %v208 = vpop.f32.mrf.mxu0
    %209 = vdwg.mxu0
    %210 = vrot.lane.b32.xlu0 %v139, 64
    %v211 = vpop.permute.xlu0 %210
    %v213 = vsel %vm117, %v184, 0
    %v216 = vsel %vm193, %v211, 0
    %218 = vmatpush.bf16.msra.mxu0 0
    %219 = vmatpush.bf16.msra.mxu0 0
    %220 = vmatpush.bf16.msra.mxu0 0
    %221 = vmatpush.bf16.msra.mxu0 0
    %222 = vmatpush.bf16.msra.mxu0 0
    %223 = vmatpush.bf16.msra.mxu0 0
    %224 = vmatpush.bf16.msra.mxu0 0
    %225 = vmatpush.bf16.msra.mxu0 %v216
    %226 = vmatmul.bf16.gmra.mxu0 %v213
    %v227 = vpop.f32.mrf.mxu0
    %v228 = vadd.f32 0.0, %v227
    %v229 = vpop.f32.mrf.mxu0
    %230 = vdwg.mxu0
    %v231 = vpack.c.bf16 %v207, %v207
    %v232 = vpack.c.bf16 %v228, %v228
    %233 = vst.msk [vmem:[#allocation2] sm:$0xf] %vm185, %v231
    %234 = vst.msk [vmem:[#allocation2 + $0x4] sm:$0xf] %vm185, %v232
    %235 = vrot.lane.b32.xlu0 %v114, 120
    %v236 = vpop.permute.xlu0 %235
    %237 = vrot.lane.b32.xlu0 %v114, 88
    %v238 = vpop.permute.xlu0 %237
    %v240 = vsel %vm117, %v236, 0
    %v243 = vsel %vm117, %v238, 0
    %245 = vmatpush.bf16.xpose.msra.mxu0 0
    %246 = vmatpush.bf16.xpose.msra.mxu0 0
    %247 = vmatpush.bf16.xpose.msra.mxu0 0
    %248 = vmatpush.bf16.xpose.msra.mxu0 0
    %249 = vmatpush.bf16.xpose.msra.mxu0 0
    %250 = vmatpush.bf16.xpose.msra.mxu0 0
    %251 = vmatpush.bf16.xpose.msra.mxu0 0
    %252 = vmatpush.bf16.xpose.msra.mxu0 %v243
    %253 = vmatmul.bf16.gmra.mxu0 %v240
    %v254 = vpop.f32.mrf.mxu0
    %v255 = vadd.f32 0.0, %v254
    %v256 = vpop.f32.mrf.mxu0
    %257 = vdwg.mxu0
    %258 = vrot.lane.b32.xlu0 %v139, 120
    %v259 = vpop.permute.xlu0 %258
    %260 = vrot.lane.b32.xlu0 %v139, 88
    %v261 = vpop.permute.xlu0 %260
    %v263 = vsel %vm117, %v259, 0
    %v266 = vsel %vm117, %v261, 0
    %268 = vmatpush.bf16.xpose.msra.mxu0 0
    %269 = vmatpush.bf16.xpose.msra.mxu0 0
    %270 = vmatpush.bf16.xpose.msra.mxu0 0
    %271 = vmatpush.bf16.xpose.msra.mxu0 0
    %272 = vmatpush.bf16.xpose.msra.mxu0 0
    %273 = vmatpush.bf16.xpose.msra.mxu0 0
    %274 = vmatpush.bf16.xpose.msra.mxu0 0
    %275 = vmatpush.bf16.xpose.msra.mxu0 %v266
    %276 = vmatmul.bf16.gmra.mxu0 %v263
    %v277 = vpop.f32.mrf.mxu0
    %v278 = vadd.f32 0.0, %v277
    %v279 = vpop.f32.mrf.mxu0
    %280 = vdwg.mxu0
    %v281 = vsel %vm117, %v255, -inf
    %282 = vmax.xlane.f32.xlu0 %v281
    %v283 = vpop.xlane.xlu0 %282
    %v284 = vsel %vm117, %v278, -inf
    %285 = vmax.xlane.f32.xlu0 %v284
    %v286 = vpop.xlane.xlu0 %285
    %v287 = vsub.f32 %v255, %v283
    %v288 = vsub.f32 %v278, %v286
    %v289 = vmul.f32 %v287, 1.442695
    %v290 = vpow.pop %v289
    %v291 = vmul.f32 %v288, 1.442695
    %v292 = vpow.pop %v291
    %v293 = vsel %vm117, %v290, 0.0
    %294 = vadd.xlane.f32.xlu0 %v293
    %v295 = vpop.xlane.xlu0 %294
    %v296 = vsel %vm117, %v292, 0.0
    %297 = vadd.xlane.f32.xlu0 %v296
    %v298 = vpop.xlane.xlu0 %297
    %v299 = vrcp.pop %v295
    %v300 = vrcp.pop %v298
    %v301 = vmul.f32 %v290, %v299
    %v302 = vmul.f32 %v292, %v300
    %v303 = vpack.c.bf16 %v301, %v301
    %v304 = vpack.c.bf16 %v302, %v302
    %s305 = scalar_lea.vmem [#allocation5], 4
    %306 = vst.msk [vmem:[%s305] sm:$0xf] %vm185, %v303
    %307 = vst.msk [vmem:[%s305 + $0x10] sm:$0xf] %vm185, %v304
    %308 = vrot.lane.b32.xlu0 %v114, 56
    %v309 = vpop.permute.xlu0 %308
    %v311 = vsel %vm117, %v303, 0
    %v314 = vsel %vm193, %v309, 0
    %316 = vmatpush.bf16.msra.mxu0 0
    %317 = vmatpush.bf16.msra.mxu0 0
    %318 = vmatpush.bf16.msra.mxu0 0
    %319 = vmatpush.bf16.msra.mxu0 0
    %320 = vmatpush.bf16.msra.mxu0 0
    %321 = vmatpush.bf16.msra.mxu0 0
    %322 = vmatpush.bf16.msra.mxu0 0
    %323 = vmatpush.bf16.msra.mxu0 %v314
    %324 = vmatmul.bf16.gmra.mxu0 %v311
    %v325 = vpop.f32.mrf.mxu0
    %v326 = vadd.f32 0.0, %v325
    %v327 = vpop.f32.mrf.mxu0
    %328 = vdwg.mxu0
    %329 = vrot.lane.b32.xlu0 %v139, 56
    %v330 = vpop.permute.xlu0 %329
    %v332 = vsel %vm117, %v304, 0
    %v335 = vsel %vm193, %v330, 0
    %337 = vmatpush.bf16.msra.mxu0 0
    %338 = vmatpush.bf16.msra.mxu0 0
    %339 = vmatpush.bf16.msra.mxu0 0
    %340 = vmatpush.bf16.msra.mxu0 0
    %341 = vmatpush.bf16.msra.mxu0 0
    %342 = vmatpush.bf16.msra.mxu0 0
    %343 = vmatpush.bf16.msra.mxu0 0
    %344 = vmatpush.bf16.msra.mxu0 %v335
    %345 = vmatmul.bf16.gmra.mxu0 %v332
    %v346 = vpop.f32.mrf.mxu0
    %v347 = vadd.f32 0.0, %v346
    %v348 = vpop.f32.mrf.mxu0
    %349 = vdwg.mxu0
    %v350 = vpack.c.bf16 %v326, %v326
    %v351 = vpack.c.bf16 %v347, %v347
    %354 = vrot.lane.b32.xlu0 %v350, 8
    %v355 = vpop.permute.xlu0 %354
    %356 = vrot.lane.b32.xlu0 %v351, 8
    %v357 = vpop.permute.xlu0 %356
    %vm360 = vcmask 126016
    %361 = vst.msk [vmem:[#allocation2] sm:$0xf] %vm360, %v355
    %362 = vst.msk [vmem:[#allocation2 + $0x4] sm:$0xf] %vm360, %v357
    %363 = vrot.lane.b32.xlu0 %v114, 112
    %v364 = vpop.permute.xlu0 %363
    %365 = vrot.lane.b32.xlu0 %v114, 80
    %v366 = vpop.permute.xlu0 %365
    %v368 = vsel %vm117, %v364, 0
    %v371 = vsel %vm117, %v366, 0
    %373 = vmatpush.bf16.xpose.msra.mxu0 0
    %374 = vmatpush.bf16.xpose.msra.mxu0 0
    %375 = vmatpush.bf16.xpose.msra.mxu0 0
    %376 = vmatpush.bf16.xpose.msra.mxu0 0
    %377 = vmatpush.bf16.xpose.msra.mxu0 0
    %378 = vmatpush.bf16.xpose.msra.mxu0 0
    %379 = vmatpush.bf16.xpose.msra.mxu0 0
    %380 = vmatpush.bf16.xpose.msra.mxu0 %v371
    %381 = vmatmul.bf16.gmra.mxu0 %v368
    %v382 = vpop.f32.mrf.mxu0
    %v383 = vadd.f32 0.0, %v382
    %v384 = vpop.f32.mrf.mxu0
    %385 = vdwg.mxu0
    %386 = vrot.lane.b32.xlu0 %v139, 112
    %v387 = vpop.permute.xlu0 %386
    %388 = vrot.lane.b32.xlu0 %v139, 80
    %v389 = vpop.permute.xlu0 %388
    %v391 = vsel %vm117, %v387, 0
    %v394 = vsel %vm117, %v389, 0
    %396 = vmatpush.bf16.xpose.msra.mxu0 0
    %397 = vmatpush.bf16.xpose.msra.mxu0 0
    %398 = vmatpush.bf16.xpose.msra.mxu0 0
    %399 = vmatpush.bf16.xpose.msra.mxu0 0
    %400 = vmatpush.bf16.xpose.msra.mxu0 0
    %401 = vmatpush.bf16.xpose.msra.mxu0 0
    %402 = vmatpush.bf16.xpose.msra.mxu0 0
    %403 = vmatpush.bf16.xpose.msra.mxu0 %v394
    %404 = vmatmul.bf16.gmra.mxu0 %v391
    %v405 = vpop.f32.mrf.mxu0
    %v406 = vadd.f32 0.0, %v405
    %v407 = vpop.f32.mrf.mxu0
    %408 = vdwg.mxu0
    %v409 = vsel %vm117, %v383, -inf
    %410 = vmax.xlane.f32.xlu0 %v409
    %v411 = vpop.xlane.xlu0 %410
    %v412 = vsel %vm117, %v406, -inf
    %413 = vmax.xlane.f32.xlu0 %v412
    %v414 = vpop.xlane.xlu0 %413
    %v415 = vsub.f32 %v383, %v411
    %v416 = vsub.f32 %v406, %v414
    %v417 = vmul.f32 %v415, 1.442695
    %v418 = vpow.pop %v417
    %v419 = vmul.f32 %v416, 1.442695
    %v420 = vpow.pop %v419
    %v421 = vsel %vm117, %v418, 0.0
    %422 = vadd.xlane.f32.xlu0 %v421
    %v423 = vpop.xlane.xlu0 %422
    %v424 = vsel %vm117, %v420, 0.0
    %425 = vadd.xlane.f32.xlu0 %v424
    %v426 = vpop.xlane.xlu0 %425
    %v427 = vrcp.pop %v423
    %v428 = vrcp.pop %v426
    %v429 = vmul.f32 %v418, %v427
    %v430 = vmul.f32 %v420, %v428
    %v431 = vpack.c.bf16 %v429, %v429
    %v432 = vpack.c.bf16 %v430, %v430
    %s433 = scalar_lea.vmem [#allocation5], 8
    %434 = vst.msk [vmem:[%s433] sm:$0xf] %vm185, %v431
    %435 = vst.msk [vmem:[%s433 + $0x10] sm:$0xf] %vm185, %v432
    %436 = vrot.lane.b32.xlu0 %v114, 48
    %v437 = vpop.permute.xlu0 %436
    %v439 = vsel %vm117, %v431, 0
    %v442 = vsel %vm193, %v437, 0
    %444 = vmatpush.bf16.msra.mxu0 0
    %445 = vmatpush.bf16.msra.mxu0 0
    %446 = vmatpush.bf16.msra.mxu0 0
    %447 = vmatpush.bf16.msra.mxu0 0
    %448 = vmatpush.bf16.msra.mxu0 0
    %449 = vmatpush.bf16.msra.mxu0 0
    %450 = vmatpush.bf16.msra.mxu0 0
    %451 = vmatpush.bf16.msra.mxu0 %v442
    %452 = vmatmul.bf16.gmra.mxu0 %v439
    %v453 = vpop.f32.mrf.mxu0
    %v454 = vadd.f32 0.0, %v453
    %v455 = vpop.f32.mrf.mxu0
    %456 = vdwg.mxu0
    %457 = vrot.lane.b32.xlu0 %v139, 48
    %v458 = vpop.permute.xlu0 %457
    %v460 = vsel %vm117, %v432, 0
    %v463 = vsel %vm193, %v458, 0
    %465 = vmatpush.bf16.msra.mxu0 0
    %466 = vmatpush.bf16.msra.mxu0 0
    %467 = vmatpush.bf16.msra.mxu0 0
    %468 = vmatpush.bf16.msra.mxu0 0
    %469 = vmatpush.bf16.msra.mxu0 0
    %470 = vmatpush.bf16.msra.mxu0 0
    %471 = vmatpush.bf16.msra.mxu0 0
    %472 = vmatpush.bf16.msra.mxu0 %v463
    %473 = vmatmul.bf16.gmra.mxu0 %v460
    %v474 = vpop.f32.mrf.mxu0
    %v475 = vadd.f32 0.0, %v474
    %v476 = vpop.f32.mrf.mxu0
    %477 = vdwg.mxu0
    %v478 = vpack.c.bf16 %v454, %v454
    %v479 = vpack.c.bf16 %v475, %v475
    %482 = vrot.lane.b32.xlu0 %v478, 16
    %v483 = vpop.permute.xlu0 %482
    %484 = vrot.lane.b32.xlu0 %v479, 16
    %v485 = vpop.permute.xlu0 %484
    %vm488 = vcmask 191616
    %489 = vst.msk [vmem:[#allocation2] sm:$0xf] %vm488, %v483
    %490 = vst.msk [vmem:[#allocation2 + $0x4] sm:$0xf] %vm488, %v485
    %491 = vrot.lane.b32.xlu0 %v114, 104
    %v492 = vpop.permute.xlu0 %491
    %493 = vrot.lane.b32.xlu0 %v114, 72
    %v494 = vpop.permute.xlu0 %493
    %v496 = vsel %vm117, %v492, 0
    %v499 = vsel %vm117, %v494, 0
    %501 = vmatpush.bf16.xpose.msra.mxu0 0
    %502 = vmatpush.bf16.xpose.msra.mxu0 0
    %503 = vmatpush.bf16.xpose.msra.mxu0 0
    %504 = vmatpush.bf16.xpose.msra.mxu0 0
    %505 = vmatpush.bf16.xpose.msra.mxu0 0
    %506 = vmatpush.bf16.xpose.msra.mxu0 0
    %507 = vmatpush.bf16.xpose.msra.mxu0 0
    %508 = vmatpush.bf16.xpose.msra.mxu0 %v499
    %509 = vmatmul.bf16.gmra.mxu0 %v496
    %v510 = vpop.f32.mrf.mxu0
    %v511 = vadd.f32 0.0, %v510
    %v512 = vpop.f32.mrf.mxu0
    %513 = vdwg.mxu0
    %514 = vrot.lane.b32.xlu0 %v139, 104
    %v515 = vpop.permute.xlu0 %514
    %516 = vrot.lane.b32.xlu0 %v139, 72
    %v517 = vpop.permute.xlu0 %516
    %v519 = vsel %vm117, %v515, 0
    %v522 = vsel %vm117, %v517, 0
    %524 = vmatpush.bf16.xpose.msra.mxu0 0
    %525 = vmatpush.bf16.xpose.msra.mxu0 0
    %526 = vmatpush.bf16.xpose.msra.mxu0 0
    %527 = vmatpush.bf16.xpose.msra.mxu0 0
    %528 = vmatpush.bf16.xpose.msra.mxu0 0
    %529 = vmatpush.bf16.xpose.msra.mxu0 0
    %530 = vmatpush.bf16.xpose.msra.mxu0 0
    %531 = vmatpush.bf16.xpose.msra.mxu0 %v522
    %532 = vmatmul.bf16.gmra.mxu0 %v519
    %v533 = vpop.f32.mrf.mxu0
    %v534 = vadd.f32 0.0, %v533
    %v535 = vpop.f32.mrf.mxu0
    %536 = vdwg.mxu0
    %v537 = vsel %vm117, %v511, -inf
    %538 = vmax.xlane.f32.xlu0 %v537
    %v539 = vpop.xlane.xlu0 %538
    %v540 = vsel %vm117, %v534, -inf
    %541 = vmax.xlane.f32.xlu0 %v540
    %v542 = vpop.xlane.xlu0 %541
    %v543 = vsub.f32 %v511, %v539
    %v544 = vsub.f32 %v534, %v542
    %v545 = vmul.f32 %v543, 1.442695
    %v546 = vpow.pop %v545
    %v547 = vmul.f32 %v544, 1.442695
    %v548 = vpow.pop %v547
    %v549 = vsel %vm117, %v546, 0.0
    %550 = vadd.xlane.f32.xlu0 %v549
    %v551 = vpop.xlane.xlu0 %550
    %v552 = vsel %vm117, %v548, 0.0
    %553 = vadd.xlane.f32.xlu0 %v552
    %v554 = vpop.xlane.xlu0 %553
    %v555 = vrcp.pop %v551
    %v556 = vrcp.pop %v554
    %v557 = vmul.f32 %v546, %v555
    %v558 = vmul.f32 %v548, %v556
    %v559 = vpack.c.bf16 %v557, %v557
    %v560 = vpack.c.bf16 %v558, %v558
    %s561 = scalar_lea.vmem [#allocation5], 12
    %562 = vst.msk [vmem:[%s561] sm:$0xf] %vm185, %v559
    %563 = vst.msk [vmem:[%s561 + $0x10] sm:$0xf] %vm185, %v560
    %564 = vrot.lane.b32.xlu0 %v114, 40
    %v565 = vpop.permute.xlu0 %564
    %v567 = vsel %vm117, %v559, 0
    %v570 = vsel %vm193, %v565, 0
    %572 = vmatpush.bf16.msra.mxu0 0
    %573 = vmatpush.bf16.msra.mxu0 0
    %574 = vmatpush.bf16.msra.mxu0 0
    %575 = vmatpush.bf16.msra.mxu0 0
    %576 = vmatpush.bf16.msra.mxu0 0
    %577 = vmatpush.bf16.msra.mxu0 0
    %578 = vmatpush.bf16.msra.mxu0 0
    %579 = vmatpush.bf16.msra.mxu0 %v570
    %580 = vmatmul.bf16.gmra.mxu0 %v567
    %v581 = vpop.f32.mrf.mxu0
    %v582 = vadd.f32 0.0, %v581
    %v583 = vpop.f32.mrf.mxu0
    %584 = vdwg.mxu0
    %585 = vrot.lane.b32.xlu0 %v139, 40
    %v586 = vpop.permute.xlu0 %585
    %v588 = vsel %vm117, %v560, 0
    %v591 = vsel %vm193, %v586, 0
    %593 = vmatpush.bf16.msra.mxu0 0
    %594 = vmatpush.bf16.msra.mxu0 0
    %595 = vmatpush.bf16.msra.mxu0 0
    %596 = vmatpush.bf16.msra.mxu0 0
    %597 = vmatpush.bf16.msra.mxu0 0
    %598 = vmatpush.bf16.msra.mxu0 0
    %599 = vmatpush.bf16.msra.mxu0 0
    %600 = vmatpush.bf16.msra.mxu0 %v591
    %601 = vmatmul.bf16.gmra.mxu0 %v588
    %v602 = vpop.f32.mrf.mxu0
    %v603 = vadd.f32 0.0, %v602
    %v604 = vpop.f32.mrf.mxu0
    %605 = vdwg.mxu0
    %v606 = vpack.c.bf16 %v582, %v582
    %v607 = vpack.c.bf16 %v603, %v603
    %610 = vrot.lane.b32.xlu0 %v606, 24
    %v611 = vpop.permute.xlu0 %610
    %612 = vrot.lane.b32.xlu0 %v607, 24
    %v613 = vpop.permute.xlu0 %612
    %vm616 = vcmask 257216
    %617 = vst.msk [vmem:[#allocation2] sm:$0xf] %vm616, %v611
    %618 = vst.msk [vmem:[#allocation2 + $0x4] sm:$0xf] %vm616, %v613
    %v619 = vld [vmem:[#allocation2] sm:$0xf]
    %v620 = vld [vmem:[#allocation2 + $0x4] sm:$0xf]
    %v621 = vld [vmem:[%s3] sm:$0xf]
    %v622 = vld [vmem:[%s3 + $0x4] sm:$0xf]
    %v623 = vld [vmem:[%s3 + $0x8] sm:$0xf]
    %v624 = vld [vmem:[%s3 + $0xc] sm:$0xf]
    %v625 = vld [vmem:[%s4] sm:$0x1]
    %v627 = vperm.slane %v625, 0
    %v631 = vunpack.c.l.b16 %v619
    %v632 = vunpack.c.l.b16 %v620
    %v633 = vpack.c.b16 %v632, %v631
    %v638 = vunpack.c.l.b16 %v621
    %v639 = vunpack.c.l.b16 %v622
    %v640 = vunpack.c.l.b16 %v623
    %v641 = vunpack.c.l.b16 %v624
    %v642 = vpack.c.b16 %v639, %v638
    %v643 = vpack.c.b16 %v641, %v640
    %vm646 = vcmask 261120
    %v648 = vsel %vm646, %v633, 0
    %650 = vmatpush.bf16.msra.mxu0 0
    %651 = vmatpush.bf16.msra.mxu0 0
    %652 = vmatpush.bf16.msra.mxu0 0
    %653 = vmatpush.bf16.msra.mxu0 0
    %654 = vmatpush.bf16.msra.mxu0 0
    %655 = vmatpush.bf16.msra.mxu0 0
    %656 = vmatpush.bf16.msra.mxu0 %v643
    %657 = vmatpush.bf16.msra.mxu0 %v642
    %658 = vmatmul.bf16.gmra.mxu0 %v648
    %v659 = vpop.f32.mrf.mxu0
    %v660 = vadd.f32 %v627, %v659
    %v661 = vpop.f32.mrf.mxu0
    %v662 = vadd.f32 %v627, %v661
    %663 = vdwg.mxu0
    %664 = vst [vmem:[#allocation3] sm:$0xff] %v660
    %665 = vst [vmem:[#allocation3 + $0x8] sm:$0xff] %v662
    // Predicated region
    $region22: #{tpu_custom_call.1} parent=1 // pred_check
      _
    $region23: #{tpu_custom_call.1} parent=1 // pred_check_branch
      %667 = sbr.rel (0) target = $region25
    $region24: #{tpu_custom_call.1} parent=1 // pred_region
      %669 = vsyncadd [#allocation4], 0
      %s670 = sshll.u32 [#allocation3], 4
      %s671 = int_to_ptr.vmem [resolvable:$true] %s670
      %s672 = sshll.u32 %s5, 4
      %s673 = int_to_ptr.hbm [resolvable:$true] %s672
      %678 = dma.vmem_to_hbm [thread:$0]  %s671, 256, %s673, [#allocation4], 128, 128, 8
    $region25: #{tpu_custom_call.1} parent=1 // pred_fallthru
      _
    // Predicated region
    $region26: #{tpu_custom_call.1} parent=1 // pred_check
      _
    $region27: #{tpu_custom_call.1} parent=1 // pred_check_branch
      %680 = sbr.rel (0) target = $region29
    $region28: #{tpu_custom_call.1} parent=1 // pred_region
      %682 = vsyncadd [#allocation6], 0
      %s683 = sshll.u32 [#allocation5], 4
      %s684 = int_to_ptr.vmem [resolvable:$true] %s683
      %s685 = sshll.u32 %s6, 4
      %s686 = int_to_ptr.hbm [resolvable:$true] %s685
      %691 = dma.vmem_to_hbm [thread:$0]  %s684, 512, %s686, [#allocation6], 64, 64, 4
    $region29: #{tpu_custom_call.1} parent=1 // pred_fallthru
      _
    // Predicated region
    $region30: #{tpu_custom_call.1} parent=1 // pred_check
      _
    $region31: #{tpu_custom_call.1} parent=1 // pred_check_branch
      %693 = sbr.rel (0) target = $region33
    $region32: #{tpu_custom_call.1} parent=1 // pred_region
      %695 = dma.done [#allocation4], 256
    $region33: #{tpu_custom_call.1} parent=1 // pred_fallthru
      _
    // Predicated region
    $region34: #{tpu_custom_call.1} parent=1 // pred_check
      _
    $region35: #{tpu_custom_call.1} parent=1 // pred_check_branch
      %697 = sbr.rel (0) target = $region37
    $region36: #{tpu_custom_call.1} parent=1 // pred_region
      %699 = dma.done [#allocation6], 512
    $region37: #{tpu_custom_call.1} parent=1 // pred_fallthru
      _
    %700 = vsyncpa [#allocation4], 1
    %701 = vsyncpa [#allocation6], 1

// kernel: tpu_custom_call.1
$region0: #{tpu_custom_call.1}
  #allocation0 [shape = 'u32[]', space=smem, size = 0x4, offset = 0x4, fixed_abs, tag = 'smem constant byte address 0x4 - core index']
  #allocation1 [shape = 'u32[72,128]{1,0:T(1,128)}', space=vmem, size = 0x9000, scoped, tag = 'internal scratch']
  #allocation2 [shape = 'bf16[2,8,32]{2,1,0:T(8,128)(2,1)}', space=vmem, size = 0x1000, scoped, tag = 'scratch operand']
  %s0 = inlined_call_operand.vmem [shape: f32[2,8,128], index: 0, kind: input, shape index: {}]
  %s1 = inlined_call_operand.vmem [shape: bf16[128,96], index: 1, kind: input, shape index: {}]
  %s2 = inlined_call_operand.vmem [shape: f32[1,96], index: 2, kind: input, shape index: {}]
  %s3 = inlined_call_operand.vmem [shape: bf16[32,128], index: 3, kind: input, shape index: {}]
  %s4 = inlined_call_operand.vmem [shape: f32[1,128], index: 4, kind: input, shape index: {}]
  %s5 = inlined_call_operand.hbm [shape: f32[2,8,128], index: 5, kind: output, shape index: {0}]
  %s6 = inlined_call_operand.hbm [shape: bf16[2,4,8,8], index: 6, kind: output, shape index: {1}]
  %7 = xla_tuple %s5, %s6
  %s8 = sld [smem:[#allocation0]]
  $region38: #{tpu_custom_call.1} parent=0
    _
  %s10 = ssub.s32 1, %s8
  %s11 = scalar_select 0, %s10, %s8
  $region1: #{tpu_custom_call.1} parent=0
    #allocation3 [shape = 'u8[8192]{0}', space=vmem, size = 0x2000, scoped, tag = 'output window, operand 0, single buffered']
    #allocation4 [shape = 's32[1]{0}', space=sflag, size = 0x4, scoped, tag = 'scoped memory for tpu_custom_call.1']
    #allocation5 [shape = 'u8[16384]{0}', space=vmem, size = 0x4000, scoped, tag = 'output window, operand 1, single buffered']
    #allocation6 [shape = 's32[1]{0}', space=sflag, size = 0x4, scoped, tag = 'scoped memory for tpu_custom_call.1']
    %12 = vsyncpa [#allocation4], 0
    %13 = vsyncpa [#allocation6], 0
    // Predicated region
    $region2: #{tpu_custom_call.1} parent=1 // pred_check
      _
    $region3: #{tpu_custom_call.1} parent=1 // pred_check_branch
      %15 = sbr.rel (0) target = $region5
    $region4: #{tpu_custom_call.1} parent=1 // pred_region
      _
    $region5: #{tpu_custom_call.1} parent=1 // pred_fallthru
      _
    // Predicated region
    $region6: #{tpu_custom_call.1} parent=1 // pred_check
      _
    $region7: #{tpu_custom_call.1} parent=1 // pred_check_branch
      %17 = sbr.rel (0) target = $region9
    $region8: #{tpu_custom_call.1} parent=1 // pred_region
      _
    $region9: #{tpu_custom_call.1} parent=1 // pred_fallthru
      _
    // Predicated region
    $region10: #{tpu_custom_call.1} parent=1 // pred_check
      _
    $region11: #{tpu_custom_call.1} parent=1 // pred_check_branch
      %19 = sbr.rel (0) target = $region13
    $region12: #{tpu_custom_call.1} parent=1 // pred_region
      _
    $region13: #{tpu_custom_call.1} parent=1 // pred_fallthru
      _
    // Predicated region
    $region14: #{tpu_custom_call.1} parent=1 // pred_check
      _
    $region15: #{tpu_custom_call.1} parent=1 // pred_check_branch
      %21 = sbr.rel (0) target = $region17
    $region16: #{tpu_custom_call.1} parent=1 // pred_region
      _
    $region17: #{tpu_custom_call.1} parent=1 // pred_fallthru
      _
    // Predicated region
    $region18: #{tpu_custom_call.1} parent=1 // pred_check
      _
    $region19: #{tpu_custom_call.1} parent=1 // pred_check_branch
      %23 = sbr.rel (0) target = $region21
    $region20: #{tpu_custom_call.1} parent=1 // pred_region
      _
    $region21: #{tpu_custom_call.1} parent=1 // pred_fallthru
      _
    %v25 = vld [vmem:[%s2] sm:$0x1]
    %v26 = vld [vmem:[%s0] sm:$0xff]
    %v27 = vld [vmem:[%s0 + $0x8] sm:$0xff]
    %v28 = vpack.c.bf16 %v27, %v26
    %v29 = vld [vmem:[%s1] sm:$0xf]
    %v30 = vld [vmem:[%s1 + $0x4] sm:$0xf]
    %v31 = vld [vmem:[%s1 + $0x8] sm:$0xf]
    %v32 = vld [vmem:[%s1 + $0xc] sm:$0xf]
    %v33 = vld [vmem:[%s1 + $0x10] sm:$0xf]
    %v34 = vld [vmem:[%s1 + $0x14] sm:$0xf]
    %v35 = vld [vmem:[%s1 + $0x18] sm:$0xf]
    %v36 = vld [vmem:[%s1 + $0x1c] sm:$0xf]
    %v37 = vld [vmem:[%s1 + $0x20] sm:$0xf]
    %v38 = vld [vmem:[%s1 + $0x24] sm:$0xf]
    %v39 = vld [vmem:[%s1 + $0x28] sm:$0xf]
    %v40 = vld [vmem:[%s1 + $0x2c] sm:$0xf]
    %v41 = vld [vmem:[%s1 + $0x30] sm:$0xf]
    %v42 = vld [vmem:[%s1 + $0x34] sm:$0xf]
    %v43 = vld [vmem:[%s1 + $0x38] sm:$0xf]
    %v44 = vld [vmem:[%s1 + $0x3c] sm:$0xf]
    %v46 = vperm.slane %v25, 0
    %v64 = vunpack.c.l.b16 %v29
    %v65 = vunpack.c.l.b16 %v30
    %v66 = vunpack.c.l.b16 %v31
    %v67 = vunpack.c.l.b16 %v32
    %v68 = vunpack.c.l.b16 %v33
    %v69 = vunpack.c.l.b16 %v34
    %v70 = vunpack.c.l.b16 %v35
    %v71 = vunpack.c.l.b16 %v36
    %v72 = vunpack.c.l.b16 %v37
    %v73 = vunpack.c.l.b16 %v38
    %v74 = vunpack.c.l.b16 %v39
    %v75 = vunpack.c.l.b16 %v40
    %v76 = vunpack.c.l.b16 %v41
    %v77 = vunpack.c.l.b16 %v42
    %v78 = vunpack.c.l.b16 %v43
    %v79 = vunpack.c.l.b16 %v44
    %v80 = vpack.c.b16 %v65, %v64
    %v81 = vpack.c.b16 %v67, %v66
    %v82 = vpack.c.b16 %v69, %v68
    %v83 = vpack.c.b16 %v71, %v70
    %v84 = vpack.c.b16 %v73, %v72
    %v85 = vpack.c.b16 %v75, %v74
    %v86 = vpack.c.b16 %v77, %v76
    %v87 = vpack.c.b16 %v79, %v78
    %96 = vmatpush.bf16.msra.mxu0 %v87
    %97 = vmatpush.bf16.msra.mxu0 %v86
    %98 = vmatpush.bf16.msra.mxu0 %v85
    %99 = vmatpush.bf16.msra.mxu0 %v84
    %100 = vmatpush.bf16.msra.mxu0 %v83
    %101 = vmatpush.bf16.msra.mxu0 %v82
    %102 = vmatpush.bf16.msra.mxu0 %v81
    %103 = vmatpush.bf16.msra.mxu0 %v80
    %104 = vmatmul.bf16.gmra.mxu0 %v28
    %v105 = vpop.f32.mrf.mxu0
    %v106 = vadd.f32 %v46, %v105
    %v107 = vpop.f32.mrf.mxu0
    %v108 = vadd.f32 %v46, %v107
    %109 = vdwg.mxu0
    %v110 = vpack.c.bf16 %v106, %v106
    %v111 = vpack.c.bf16 %v108, %v108
    %v113 = vunpack.c.l.b16 %v110
    %v114 = vpack.c.b16 %v113, %v113
    %115 = vrot.lane.b32.xlu0 %v114, 96
    %v116 = vpop.permute.xlu0 %115
    %vm117 = vcmask 64512
    %v119 = vsel %vm117, %v110, 0
    %v122 = vsel %vm117, %v116, 0
    %124 = vmatpush.bf16.xpose.msra.mxu0 0
    %125 = vmatpush.bf16.xpose.msra.mxu0 0
    %126 = vmatpush.bf16.xpose.msra.mxu0 0
    %127 = vmatpush.bf16.xpose.msra.mxu0 0
    %128 = vmatpush.bf16.xpose.msra.mxu0 0
    %129 = vmatpush.bf16.xpose.msra.mxu0 0
    %130 = vmatpush.bf16.xpose.msra.mxu0 0
    %131 = vmatpush.bf16.xpose.msra.mxu0 %v122
    %132 = vmatmul.bf16.gmra.mxu0 %v119
    %v133 = vpop.f32.mrf.mxu0
    %v134 = vadd.f32 0.0, %v133
    %v135 = vpop.f32.mrf.mxu0
    %136 = vdwg.mxu0
    %v138 = vunpack.c.l.b16 %v111
    %v139 = vpack.c.b16 %v138, %v138
    %140 = vrot.lane.b32.xlu0 %v139, 96
    %v141 = vpop.permute.xlu0 %140
    %v143 = vsel %vm117, %v111, 0
    %v146 = vsel %vm117, %v141, 0
    %148 = vmatpush.bf16.xpose.msra.mxu0 0
    %149 = vmatpush.bf16.xpose.msra.mxu0 0
    %150 = vmatpush.bf16.xpose.msra.mxu0 0
    %151 = vmatpush.bf16.xpose.msra.mxu0 0
    %152 = vmatpush.bf16.xpose.msra.mxu0 0
    %153 = vmatpush.bf16.xpose.msra.mxu0 0
    %154 = vmatpush.bf16.xpose.msra.mxu0 0
    %155 = vmatpush.bf16.xpose.msra.mxu0 %v146
    %156 = vmatmul.bf16.gmra.mxu0 %v143
    %v157 = vpop.f32.mrf.mxu0
    %v158 = vadd.f32 0.0, %v157
    %v159 = vpop.f32.mrf.mxu0
    %160 = vdwg.mxu0
    %v161 = vsel %vm117, %v134, -inf
    %162 = vmax.xlane.f32.xlu0 %v161
    %v163 = vpop.xlane.xlu0 %162
    %v164 = vsel %vm117, %v158, -inf
    %165 = vmax.xlane.f32.xlu0 %v164
    %v166 = vpop.xlane.xlu0 %165
    %v167 = vsub.f32 %v134, %v163
    %v168 = vsub.f32 %v158, %v166
    %v169 = vmul.f32 %v167, 1.442695
    %v170 = vpow.pop %v169
    %v171 = vmul.f32 %v168, 1.442695
    %v172 = vpow.pop %v171
    %v173 = vsel %vm117, %v170, 0.0
    %174 = vadd.xlane.f32.xlu0 %v173
    %v175 = vpop.xlane.xlu0 %174
    %v176 = vsel %vm117, %v172, 0.0
    %177 = vadd.xlane.f32.xlu0 %v176
    %v178 = vpop.xlane.xlu0 %177
    %v179 = vrcp.pop %v175
    %v180 = vrcp.pop %v178
    %v181 = vmul.f32 %v170, %v179
    %v182 = vmul.f32 %v172, %v180
    %v183 = vpack.c.bf16 %v181, %v181
    %v184 = vpack.c.bf16 %v182, %v182
    %vm185 = vcmask 60416
    %186 = vst.msk [vmem:[#allocation5] sm:$0xf] %vm185, %v183
    %187 = vst.msk [vmem:[#allocation5 + $0x10] sm:$0xf] %vm185, %v184
    %188 = vrot.lane.b32.xlu0 %v114, 64
    %v189 = vpop.permute.xlu0 %188
    %v191 = vsel %vm117, %v183, 0
    %vm193 = vcmask 1043456
    %v195 = vsel %vm193, %v189, 0
    %197 = vmatpush.bf16.msra.mxu0 0
    %198 = vmatpush.bf16.msra.mxu0 0
    %199 = vmatpush.bf16.msra.mxu0 0
    %200 = vmatpush.bf16.msra.mxu0 0
    %201 = vmatpush.bf16.msra.mxu0 0
    %202 = vmatpush.bf16.msra.mxu0 0
    %203 = vmatpush.bf16.msra.mxu0 0
    %204 = vmatpush.bf16.msra.mxu0 %v195
    %205 = vmatmul.bf16.gmra.mxu0 %v191
    %v206 = vpop.f32.mrf.mxu0
    %v207 = vadd.f32 0.0, %v206
    %v208 = vpop.f32.mrf.mxu0
    %209 = vdwg.mxu0
    %210 = vrot.lane.b32.xlu0 %v139, 64
    %v211 = vpop.permute.xlu0 %210
    %v213 = vsel %vm117, %v184, 0
    %v216 = vsel %vm193, %v211, 0
    %218 = vmatpush.bf16.msra.mxu0 0
    %219 = vmatpush.bf16.msra.mxu0 0
    %220 = vmatpush.bf16.msra.mxu0 0
    %221 = vmatpush.bf16.msra.mxu0 0
    %222 = vmatpush.bf16.msra.mxu0 0
    %223 = vmatpush.bf16.msra.mxu0 0
    %224 = vmatpush.bf16.msra.mxu0 0
    %225 = vmatpush.bf16.msra.mxu0 %v216
    %226 = vmatmul.bf16.gmra.mxu0 %v213
    %v227 = vpop.f32.mrf.mxu0
    %v228 = vadd.f32 0.0, %v227
    %v229 = vpop.f32.mrf.mxu0
    %230 = vdwg.mxu0
    %v231 = vpack.c.bf16 %v207, %v207
    %v232 = vpack.c.bf16 %v228, %v228
    %233 = vst.msk [vmem:[#allocation2] sm:$0xf] %vm185, %v231
    %234 = vst.msk [vmem:[#allocation2 + $0x4] sm:$0xf] %vm185, %v232
    %235 = vrot.lane.b32.xlu0 %v114, 120
    %v236 = vpop.permute.xlu0 %235
    %237 = vrot.lane.b32.xlu0 %v114, 88
    %v238 = vpop.permute.xlu0 %237
    %v240 = vsel %vm117, %v236, 0
    %v243 = vsel %vm117, %v238, 0
    %245 = vmatpush.bf16.xpose.msra.mxu0 0
    %246 = vmatpush.bf16.xpose.msra.mxu0 0
    %247 = vmatpush.bf16.xpose.msra.mxu0 0
    %248 = vmatpush.bf16.xpose.msra.mxu0 0
    %249 = vmatpush.bf16.xpose.msra.mxu0 0
    %250 = vmatpush.bf16.xpose.msra.mxu0 0
    %251 = vmatpush.bf16.xpose.msra.mxu0 0
    %252 = vmatpush.bf16.xpose.msra.mxu0 %v243
    %253 = vmatmul.bf16.gmra.mxu0 %v240
    %v254 = vpop.f32.mrf.mxu0
    %v255 = vadd.f32 0.0, %v254
    %v256 = vpop.f32.mrf.mxu0
    %257 = vdwg.mxu0
    %258 = vrot.lane.b32.xlu0 %v139, 120
    %v259 = vpop.permute.xlu0 %258
    %260 = vrot.lane.b32.xlu0 %v139, 88
    %v261 = vpop.permute.xlu0 %260
    %v263 = vsel %vm117, %v259, 0
    %v266 = vsel %vm117, %v261, 0
    %268 = vmatpush.bf16.xpose.msra.mxu0 0
    %269 = vmatpush.bf16.xpose.msra.mxu0 0
    %270 = vmatpush.bf16.xpose.msra.mxu0 0
    %271 = vmatpush.bf16.xpose.msra.mxu0 0
    %272 = vmatpush.bf16.xpose.msra.mxu0 0
    %273 = vmatpush.bf16.xpose.msra.mxu0 0
    %274 = vmatpush.bf16.xpose.msra.mxu0 0
    %275 = vmatpush.bf16.xpose.msra.mxu0 %v266
    %276 = vmatmul.bf16.gmra.mxu0 %v263
    %v277 = vpop.f32.mrf.mxu0
    %v278 = vadd.f32 0.0, %v277
    %v279 = vpop.f32.mrf.mxu0
    %280 = vdwg.mxu0
    %v281 = vsel %vm117, %v255, -inf
    %282 = vmax.xlane.f32.xlu0 %v281
    %v283 = vpop.xlane.xlu0 %282
    %v284 = vsel %vm117, %v278, -inf
    %285 = vmax.xlane.f32.xlu0 %v284
    %v286 = vpop.xlane.xlu0 %285
    %v287 = vsub.f32 %v255, %v283
    %v288 = vsub.f32 %v278, %v286
    %v289 = vmul.f32 %v287, 1.442695
    %v290 = vpow.pop %v289
    %v291 = vmul.f32 %v288, 1.442695
    %v292 = vpow.pop %v291
    %v293 = vsel %vm117, %v290, 0.0
    %294 = vadd.xlane.f32.xlu0 %v293
    %v295 = vpop.xlane.xlu0 %294
    %v296 = vsel %vm117, %v292, 0.0
    %297 = vadd.xlane.f32.xlu0 %v296
    %v298 = vpop.xlane.xlu0 %297
    %v299 = vrcp.pop %v295
    %v300 = vrcp.pop %v298
    %v301 = vmul.f32 %v290, %v299
    %v302 = vmul.f32 %v292, %v300
    %v303 = vpack.c.bf16 %v301, %v301
    %v304 = vpack.c.bf16 %v302, %v302
    %s305 = scalar_lea.vmem [#allocation5], 4
    %306 = vst.msk [vmem:[%s305] sm:$0xf] %vm185, %v303
    %307 = vst.msk [vmem:[%s305 + $0x10] sm:$0xf] %vm185, %v304
    %308 = vrot.lane.b32.xlu0 %v114, 56
    %v309 = vpop.permute.xlu0 %308
    %v311 = vsel %vm117, %v303, 0
    %v314 = vsel %vm193, %v309, 0
    %316 = vmatpush.bf16.msra.mxu0 0
    %317 = vmatpush.bf16.msra.mxu0 0
    %318 = vmatpush.bf16.msra.mxu0 0
    %319 = vmatpush.bf16.msra.mxu0 0
    %320 = vmatpush.bf16.msra.mxu0 0
    %321 = vmatpush.bf16.msra.mxu0 0
    %322 = vmatpush.bf16.msra.mxu0 0
    %323 = vmatpush.bf16.msra.mxu0 %v314
    %324 = vmatmul.bf16.gmra.mxu0 %v311
    %v325 = vpop.f32.mrf.mxu0
    %v326 = vadd.f32 0.0, %v325
    %v327 = vpop.f32.mrf.mxu0
    %328 = vdwg.mxu0
    %329 = vrot.lane.b32.xlu0 %v139, 56
    %v330 = vpop.permute.xlu0 %329
    %v332 = vsel %vm117, %v304, 0
    %v335 = vsel %vm193, %v330, 0
    %337 = vmatpush.bf16.msra.mxu0 0
    %338 = vmatpush.bf16.msra.mxu0 0
    %339 = vmatpush.bf16.msra.mxu0 0
    %340 = vmatpush.bf16.msra.mxu0 0
    %341 = vmatpush.bf16.msra.mxu0 0
    %342 = vmatpush.bf16.msra.mxu0 0
    %343 = vmatpush.bf16.msra.mxu0 0
    %344 = vmatpush.bf16.msra.mxu0 %v335
    %345 = vmatmul.bf16.gmra.mxu0 %v332
    %v346 = vpop.f32.mrf.mxu0
    %v347 = vadd.f32 0.0, %v346
    %v348 = vpop.f32.mrf.mxu0
    %349 = vdwg.mxu0
    %v350 = vpack.c.bf16 %v326, %v326
    %v351 = vpack.c.bf16 %v347, %v347
    %354 = vrot.lane.b32.xlu0 %v350, 8
    %v355 = vpop.permute.xlu0 %354
    %356 = vrot.lane.b32.xlu0 %v351, 8
    %v357 = vpop.permute.xlu0 %356
    %vm360 = vcmask 126016
    %361 = vst.msk [vmem:[#allocation2] sm:$0xf] %vm360, %v355
    %362 = vst.msk [vmem:[#allocation2 + $0x4] sm:$0xf] %vm360, %v357
    %363 = vrot.lane.b32.xlu0 %v114, 112
    %v364 = vpop.permute.xlu0 %363
    %365 = vrot.lane.b32.xlu0 %v114, 80
    %v366 = vpop.permute.xlu0 %365
    %v368 = vsel %vm117, %v364, 0
    %v371 = vsel %vm117, %v366, 0
    %373 = vmatpush.bf16.xpose.msra.mxu0 0
    %374 = vmatpush.bf16.xpose.msra.mxu0 0
    %375 = vmatpush.bf16.xpose.msra.mxu0 0
    %376 = vmatpush.bf16.xpose.msra.mxu0 0
    %377 = vmatpush.bf16.xpose.msra.mxu0 0
    %378 = vmatpush.bf16.xpose.msra.mxu0 0
    %379 = vmatpush.bf16.xpose.msra.mxu0 0
    %380 = vmatpush.bf16.xpose.msra.mxu0 %v371
    %381 = vmatmul.bf16.gmra.mxu0 %v368
    %v382 = vpop.f32.mrf.mxu0
    %v383 = vadd.f32 0.0, %v382
    %v384 = vpop.f32.mrf.mxu0
    %385 = vdwg.mxu0
    %386 = vrot.lane.b32.xlu0 %v139, 112
    %v387 = vpop.permute.xlu0 %386
    %388 = vrot.lane.b32.xlu0 %v139, 80
    %v389 = vpop.permute.xlu0 %388
    %v391 = vsel %vm117, %v387, 0
    %v394 = vsel %vm117, %v389, 0
    %396 = vmatpush.bf16.xpose.msra.mxu0 0
    %397 = vmatpush.bf16.xpose.msra.mxu0 0
    %398 = vmatpush.bf16.xpose.msra.mxu0 0
    %399 = vmatpush.bf16.xpose.msra.mxu0 0
    %400 = vmatpush.bf16.xpose.msra.mxu0 0
    %401 = vmatpush.bf16.xpose.msra.mxu0 0
    %402 = vmatpush.bf16.xpose.msra.mxu0 0
    %403 = vmatpush.bf16.xpose.msra.mxu0 %v394
    %404 = vmatmul.bf16.gmra.mxu0 %v391
    %v405 = vpop.f32.mrf.mxu0
    %v406 = vadd.f32 0.0, %v405
    %v407 = vpop.f32.mrf.mxu0
    %408 = vdwg.mxu0
    %v409 = vsel %vm117, %v383, -inf
    %410 = vmax.xlane.f32.xlu0 %v409
    %v411 = vpop.xlane.xlu0 %410
    %v412 = vsel %vm117, %v406, -inf
    %413 = vmax.xlane.f32.xlu0 %v412
    %v414 = vpop.xlane.xlu0 %413
    %v415 = vsub.f32 %v383, %v411
    %v416 = vsub.f32 %v406, %v414
    %v417 = vmul.f32 %v415, 1.442695
    %v418 = vpow.pop %v417
    %v419 = vmul.f32 %v416, 1.442695
    %v420 = vpow.pop %v419
    %v421 = vsel %vm117, %v418, 0.0
    %422 = vadd.xlane.f32.xlu0 %v421
    %v423 = vpop.xlane.xlu0 %422
    %v424 = vsel %vm117, %v420, 0.0
    %425 = vadd.xlane.f32.xlu0 %v424
    %v426 = vpop.xlane.xlu0 %425
    %v427 = vrcp.pop %v423
    %v428 = vrcp.pop %v426
    %v429 = vmul.f32 %v418, %v427
    %v430 = vmul.f32 %v420, %v428
    %v431 = vpack.c.bf16 %v429, %v429
    %v432 = vpack.c.bf16 %v430, %v430
    %s433 = scalar_lea.vmem [#allocation5], 8
    %434 = vst.msk [vmem:[%s433] sm:$0xf] %vm185, %v431
    %435 = vst.msk [vmem:[%s433 + $0x10] sm:$0xf] %vm185, %v432
    %436 = vrot.lane.b32.xlu0 %v114, 48
    %v437 = vpop.permute.xlu0 %436
    %v439 = vsel %vm117, %v431, 0
    %v442 = vsel %vm193, %v437, 0
    %444 = vmatpush.bf16.msra.mxu0 0
    %445 = vmatpush.bf16.msra.mxu0 0
    %446 = vmatpush.bf16.msra.mxu0 0
    %447 = vmatpush.bf16.msra.mxu0 0
    %448 = vmatpush.bf16.msra.mxu0 0
    %449 = vmatpush.bf16.msra.mxu0 0
    %450 = vmatpush.bf16.msra.mxu0 0
    %451 = vmatpush.bf16.msra.mxu0 %v442
    %452 = vmatmul.bf16.gmra.mxu0 %v439
    %v453 = vpop.f32.mrf.mxu0
    %v454 = vadd.f32 0.0, %v453
    %v455 = vpop.f32.mrf.mxu0
    %456 = vdwg.mxu0
    %457 = vrot.lane.b32.xlu0 %v139, 48
    %v458 = vpop.permute.xlu0 %457
    %v460 = vsel %vm117, %v432, 0
    %v463 = vsel %vm193, %v458, 0
    %465 = vmatpush.bf16.msra.mxu0 0
    %466 = vmatpush.bf16.msra.mxu0 0
    %467 = vmatpush.bf16.msra.mxu0 0
    %468 = vmatpush.bf16.msra.mxu0 0
    %469 = vmatpush.bf16.msra.mxu0 0
    %470 = vmatpush.bf16.msra.mxu0 0
    %471 = vmatpush.bf16.msra.mxu0 0
    %472 = vmatpush.bf16.msra.mxu0 %v463
    %473 = vmatmul.bf16.gmra.mxu0 %v460
    %v474 = vpop.f32.mrf.mxu0
    %v475 = vadd.f32 0.0, %v474
    %v476 = vpop.f32.mrf.mxu0
    %477 = vdwg.mxu0
    %v478 = vpack.c.bf16 %v454, %v454
    %v479 = vpack.c.bf16 %v475, %v475
    %482 = vrot.lane.b32.xlu0 %v478, 16
    %v483 = vpop.permute.xlu0 %482
    %484 = vrot.lane.b32.xlu0 %v479, 16
    %v485 = vpop.permute.xlu0 %484
    %vm488 = vcmask 191616
    %489 = vst.msk [vmem:[#allocation2] sm:$0xf] %vm488, %v483
    %490 = vst.msk [vmem:[#allocation2 + $0x4] sm:$0xf] %vm488, %v485
    %491 = vrot.lane.b32.xlu0 %v114, 104
    %v492 = vpop.permute.xlu0 %491
    %493 = vrot.lane.b32.xlu0 %v114, 72
    %v494 = vpop.permute.xlu0 %493
    %v496 = vsel %vm117, %v492, 0
    %v499 = vsel %vm117, %v494, 0
    %501 = vmatpush.bf16.xpose.msra.mxu0 0
    %502 = vmatpush.bf16.xpose.msra.mxu0 0
    %503 = vmatpush.bf16.xpose.msra.mxu0 0
    %504 = vmatpush.bf16.xpose.msra.mxu0 0
    %505 = vmatpush.bf16.xpose.msra.mxu0 0
    %506 = vmatpush.bf16.xpose.msra.mxu0 0
    %507 = vmatpush.bf16.xpose.msra.mxu0 0
    %508 = vmatpush.bf16.xpose.msra.mxu0 %v499
    %509 = vmatmul.bf16.gmra.mxu0 %v496
    %v510 = vpop.f32.mrf.mxu0
    %v511 = vadd.f32 0.0, %v510
    %v512 = vpop.f32.mrf.mxu0
    %513 = vdwg.mxu0
    %514 = vrot.lane.b32.xlu0 %v139, 104
    %v515 = vpop.permute.xlu0 %514
    %516 = vrot.lane.b32.xlu0 %v139, 72
    %v517 = vpop.permute.xlu0 %516
    %v519 = vsel %vm117, %v515, 0
    %v522 = vsel %vm117, %v517, 0
    %524 = vmatpush.bf16.xpose.msra.mxu0 0
    %525 = vmatpush.bf16.xpose.msra.mxu0 0
    %526 = vmatpush.bf16.xpose.msra.mxu0 0
    %527 = vmatpush.bf16.xpose.msra.mxu0 0
    %528 = vmatpush.bf16.xpose.msra.mxu0 0
    %529 = vmatpush.bf16.xpose.msra.mxu0 0
    %530 = vmatpush.bf16.xpose.msra.mxu0 0
    %531 = vmatpush.bf16.xpose.msra.mxu0 %v522
    %532 = vmatmul.bf16.gmra.mxu0 %v519
    %v533 = vpop.f32.mrf.mxu0
    %v534 = vadd.f32 0.0, %v533
    %v535 = vpop.f32.mrf.mxu0
    %536 = vdwg.mxu0
    %v537 = vsel %vm117, %v511, -inf
    %538 = vmax.xlane.f32.xlu0 %v537
    %v539 = vpop.xlane.xlu0 %538
    %v540 = vsel %vm117, %v534, -inf
    %541 = vmax.xlane.f32.xlu0 %v540
    %v542 = vpop.xlane.xlu0 %541
    %v543 = vsub.f32 %v511, %v539
    %v544 = vsub.f32 %v534, %v542
    %v545 = vmul.f32 %v543, 1.442695
    %v546 = vpow.pop %v545
    %v547 = vmul.f32 %v544, 1.442695
    %v548 = vpow.pop %v547
    %v549 = vsel %vm117, %v546, 0.0
    %550 = vadd.xlane.f32.xlu0 %v549
    %v551 = vpop.xlane.xlu0 %550
    %v552 = vsel %vm117, %v548, 0.0
    %553 = vadd.xlane.f32.xlu0 %v552
    %v554 = vpop.xlane.xlu0 %553
    %v555 = vrcp.pop %v551
    %v556 = vrcp.pop %v554
    %v557 = vmul.f32 %v546, %v555
    %v558 = vmul.f32 %v548, %v556
    %v559 = vpack.c.bf16 %v557, %v557
    %v560 = vpack.c.bf16 %v558, %v558
    %s561 = scalar_lea.vmem [#allocation5], 12
    %562 = vst.msk [vmem:[%s561] sm:$0xf] %vm185, %v559
    %563 = vst.msk [vmem:[%s561 + $0x10] sm:$0xf] %vm185, %v560
    %564 = vrot.lane.b32.xlu0 %v114, 40
    %v565 = vpop.permute.xlu0 %564
    %v567 = vsel %vm117, %v559, 0
    %v570 = vsel %vm193, %v565, 0
    %572 = vmatpush.bf16.msra.mxu0 0
    %573 = vmatpush.bf16.msra.mxu0 0
    %574 = vmatpush.bf16.msra.mxu0 0
    %575 = vmatpush.bf16.msra.mxu0 0
    %576 = vmatpush.bf16.msra.mxu0 0
    %577 = vmatpush.bf16.msra.mxu0 0
    %578 = vmatpush.bf16.msra.mxu0 0
    %579 = vmatpush.bf16.msra.mxu0 %v570
    %580 = vmatmul.bf16.gmra.mxu0 %v567
    %v581 = vpop.f32.mrf.mxu0
    %v582 = vadd.f32 0.0, %v581
    %v583 = vpop.f32.mrf.mxu0
    %584 = vdwg.mxu0
    %585 = vrot.lane.b32.xlu0 %v139, 40
    %v586 = vpop.permute.xlu0 %585
    %v588 = vsel %vm117, %v560, 0
    %v591 = vsel %vm193, %v586, 0
    %593 = vmatpush.bf16.msra.mxu0 0
    %594 = vmatpush.bf16.msra.mxu0 0
    %595 = vmatpush.bf16.msra.mxu0 0
    %596 = vmatpush.bf16.msra.mxu0 0
    %597 = vmatpush.bf16.msra.mxu0 0
    %598 = vmatpush.bf16.msra.mxu0 0
    %599 = vmatpush.bf16.msra.mxu0 0
    %600 = vmatpush.bf16.msra.mxu0 %v591
    %601 = vmatmul.bf16.gmra.mxu0 %v588
    %v602 = vpop.f32.mrf.mxu0
    %v603 = vadd.f32 0.0, %v602
    %v604 = vpop.f32.mrf.mxu0
    %605 = vdwg.mxu0
    %v606 = vpack.c.bf16 %v582, %v582
    %v607 = vpack.c.bf16 %v603, %v603
    %610 = vrot.lane.b32.xlu0 %v606, 24
    %v611 = vpop.permute.xlu0 %610
    %612 = vrot.lane.b32.xlu0 %v607, 24
    %v613 = vpop.permute.xlu0 %612
    %vm616 = vcmask 257216
    %617 = vst.msk [vmem:[#allocation2] sm:$0xf] %vm616, %v611
    %618 = vst.msk [vmem:[#allocation2 + $0x4] sm:$0xf] %vm616, %v613
    %v619 = vld [vmem:[#allocation2] sm:$0xf]
    %v620 = vld [vmem:[#allocation2 + $0x4] sm:$0xf]
    %v621 = vld [vmem:[%s3] sm:$0xf]
    %v622 = vld [vmem:[%s3 + $0x4] sm:$0xf]
    %v623 = vld [vmem:[%s3 + $0x8] sm:$0xf]
    %v624 = vld [vmem:[%s3 + $0xc] sm:$0xf]
    %v625 = vld [vmem:[%s4] sm:$0x1]
    %v627 = vperm.slane %v625, 0
    %v631 = vunpack.c.l.b16 %v619
    %v632 = vunpack.c.l.b16 %v620
    %v633 = vpack.c.b16 %v632, %v631
    %v638 = vunpack.c.l.b16 %v621
    %v639 = vunpack.c.l.b16 %v622
    %v640 = vunpack.c.l.b16 %v623
    %v641 = vunpack.c.l.b16 %v624
    %v642 = vpack.c.b16 %v639, %v638
    %v643 = vpack.c.b16 %v641, %v640
    %vm646 = vcmask 261120
    %v648 = vsel %vm646, %v633, 0
    %650 = vmatpush.bf16.msra.mxu0 0
    %651 = vmatpush.bf16.msra.mxu0 0
    %652 = vmatpush.bf16.msra.mxu0 0
    %653 = vmatpush.bf16.msra.mxu0 0
    %654 = vmatpush.bf16.msra.mxu0 0
    %655 = vmatpush.bf16.msra.mxu0 0
    %656 = vmatpush.bf16.msra.mxu0 %v643
    %657 = vmatpush.bf16.msra.mxu0 %v642
    %658 = vmatmul.bf16.gmra.mxu0 %v648
    %v659 = vpop.f32.mrf.mxu0
    %v660 = vadd.f32 %v627, %v659
    %v661 = vpop.f32.mrf.mxu0
    %v662 = vadd.f32 %v627, %v661
    %663 = vdwg.mxu0
    %664 = vst [vmem:[#allocation3] sm:$0xff] %v660
    %665 = vst [vmem:[#allocation3 + $0x8] sm:$0xff] %v662
    // Predicated region
    $region22: #{tpu_custom_call.1} parent=1 // pred_check
      _
    $region23: #{tpu_custom_call.1} parent=1 // pred_check_branch
      %667 = sbr.rel (0) target = $region25
    $region24: #{tpu_custom_call.1} parent=1 // pred_region
      %669 = vsyncadd [#allocation4], 0
      %s670 = sshll.u32 [#allocation3], 4
      %s671 = int_to_ptr.vmem [resolvable:$true] %s670
      %s672 = sshll.u32 %s5, 4
      %s673 = int_to_ptr.hbm [resolvable:$true] %s672
      %678 = dma.vmem_to_hbm [thread:$0]  %s671, 256, %s673, [#allocation4], 128, 128, 8
    $region25: #{tpu_custom_call.1} parent=1 // pred_fallthru
      _
    // Predicated region
    $region26: #{tpu_custom_call.1} parent=1 // pred_check
      _
    $region27: #{tpu_custom_call.1} parent=1 // pred_check_branch
      %680 = sbr.rel (0) target = $region29
    $region28: #{tpu_custom_call.1} parent=1 // pred_region
      %682 = vsyncadd [#allocation6], 0
      %s683 = sshll.u32 [#allocation5], 4
      %s684 = int_to_ptr.vmem [resolvable:$true] %s683
      %s685 = sshll.u32 %s6, 4
      %s686 = int_to_ptr.hbm [resolvable:$true] %s685
      %691 = dma.vmem_to_hbm [thread:$0]  %s684, 512, %s686, [#allocation6], 64, 64, 4
    $region29: #{tpu_custom_call.1} parent=1 // pred_fallthru
      _
    // Predicated region
    $region30: #{tpu_custom_call.1} parent=1 // pred_check
      _
    $region31: #{tpu_custom_call.1} parent=1 // pred_check_branch
      %693 = sbr.rel (0) target = $region33
    $region32: #{tpu_custom_call.1} parent=1 // pred_region
      %695 = dma.done [#allocation4], 256
    $region33: #{tpu_custom_call.1} parent=1 // pred_fallthru
      _
    // Predicated region
    $region34: #{tpu_custom_call.1} parent=1 // pred_check
      _
    $region35: #{tpu_custom_call.1} parent=1 // pred_check_branch
      %697 = sbr.rel (0) target = $region37
    $region36: #{tpu_custom_call.1} parent=1 // pred_region
      %699 = dma.done [#allocation6], 512
    $region37: #{tpu_custom_call.1} parent=1 // pred_fallthru
      _
    %700 = vsyncpa [#allocation4], 1
    %701 = vsyncpa [#allocation6], 1

</llo_original>
